<compile_context>
chip_gen: v7x
topology: tpu7x:2x2x1
jax: 0.10.0
libtpu: 0.0.40
codegen_flags: <defaults>
</compile_context>

<pallas_src>
import math
import functools

import jax
import jax.numpy as jnp
from jax.experimental import pallas as pl
from jax.experimental.pallas import tpu as pltpu

EPS = 1e-5


def _round_up(x, m):
    return ((x + m - 1) // m) * m


def _derive_vmem_limit():
    # v5e/v6e: 128 MiB VMEM per TensorCore, v7x: 64 MiB.  Request at most half the physical
    # capacity (capped at 48 MiB) so double-buffering always has headroom on every generation.
    try:
        cap = int(getattr(pltpu.get_tpu_info(), "vmem_capacity_bytes", 0))
    except Exception:
        cap = 0
    if cap <= 0:
        cap = 64 * 1024 * 1024
    return int(min(cap // 2, 48 * 1024 * 1024))


_VMEM_LIMIT = _derive_vmem_limit()


# ---------------------------------------------------------------------------
# Pallas kernels
# ---------------------------------------------------------------------------
def _mm_kernel(*refs, relu, has_add):
    """Tiled matmul with fused per-channel scale/bias (BN), optional ReLU, optional residual."""
    if has_add:
        a_ref, w_ref, s_ref, b_ref, add_ref, o_ref, acc_ref = refs
    else:
        a_ref, w_ref, s_ref, b_ref, o_ref, acc_ref = refs
        add_ref = None

    @pl.when(pl.program_id(2) == 0)
    def _():
        acc_ref[...] = jnp.zeros_like(acc_ref)

    acc_ref[...] += jnp.dot(a_ref[...], w_ref[...],
                            preferred_element_type=jnp.float32)

    @pl.when(pl.program_id(2) == pl.num_programs(2) - 1)
    def _():
        y = acc_ref[...] * s_ref[...] + b_ref[...]
        if relu:
            y = jnp.maximum(y, 0.0)
        if has_add:
            y = y + add_ref[...].astype(jnp.float32)
        o_ref[...] = y.astype(o_ref.dtype)


def _pick_tiles(M, K, N):
    """Adaptive tile sizes: no over-padding of tiny dims, big tiles for big dims."""
    Mp = _round_up(M, 8)
    tm = Mp if Mp <= 512 else 512
    Mp = _round_up(Mp, tm)
    Kp = _round_up(K, 128)
    tk = Kp if Kp <= 1536 else 512
    Kp = _round_up(Kp, tk)
    Np = _round_up(N, 128)
    tn = Np if Np <= 512 else 256
    Np = _round_up(Np, tn)
    return tm, tk, tn, Mp, Kp, Np


def matmul_bn_act(a, w, scale, bias, relu=False, add=None):
    """a:(M,K), w:(K,N), scale/bias:(N,) f32, add: optional (M,N) -> bf16 (M,N)."""
    M, K = a.shape
    K2, N = w.shape
    assert K == K2
    tm, tk, tn, Mp, Kp, Np = _pick_tiles(M, K, N)

    a_p = jnp.pad(a.astype(jnp.bfloat16), ((0, Mp - M), (0, Kp - K)))
    w_p = jnp.pad(w.astype(jnp.bfloat16), ((0, Kp - K), (0, Np - N)))
    s_p = jnp.pad(scale.astype(jnp.float32), (0, Np - N)).reshape(1, Np)
    b_p = jnp.pad(bias.astype(jnp.float32), (0, Np - N)).reshape(1, Np)

    inputs = [a_p, w_p, s_p, b_p]
    in_specs = [
        pl.BlockSpec((tm, tk), lambda i, j, k: (i, k)),
        pl.BlockSpec((tk, tn), lambda i, j, k: (k, j)),
        pl.BlockSpec((1, tn), lambda i, j, k: (0, j)),
        pl.BlockSpec((1, tn), lambda i, j, k: (0, j)),
    ]
    has_add = add is not None
    if has_add:
        inputs.append(jnp.pad(add.astype(jnp.bfloat16), ((0, Mp - M), (0, Np - N))))
        in_specs.append(pl.BlockSpec((tm, tn), lambda i, j, k: (i, j)))

    grid = (Mp // tm, Np // tn, Kp // tk)
    out = pl.pallas_call(
        functools.partial(_mm_kernel, relu=relu, has_add=has_add),
        out_shape=jax.ShapeDtypeStruct((Mp, Np), jnp.bfloat16),
        grid_spec=pltpu.PrefetchScalarGridSpec(
            num_scalar_prefetch=0,
            grid=grid,
            in_specs=in_specs,
            out_specs=pl.BlockSpec((tm, tn), lambda i, j, k: (i, j)),
            scratch_shapes=[pltpu.VMEM((tm, tn), jnp.float32)],
        ),
        compiler_params=pltpu.CompilerParams(
            dimension_semantics=("parallel", "parallel", "arbitrary"),
            vmem_limit_bytes=_VMEM_LIMIT,
        ),
    )(*inputs)
    return out[:M, :N]


def _sepconv_kernel(x_ref, dw_ref, pw_ref, s_ref, b_ref, *rest,
                    taps, m_out, pre_relu, post_relu, has_skip):
    """Fused stride-1 separable conv: [relu] -> depthwise 3x3 (tap offsets into the flattened
    padded input) -> pointwise MXU matmul (accumulated over Cin tiles) -> BN -> [relu] -> [+skip].
    Grid = (batch, Cin_tiles)."""
    if has_skip:
        skip_ref, o_ref, acc_ref = rest
    else:
        o_ref, acc_ref = rest
        skip_ref = None

    @pl.when(pl.program_id(1) == 0)
    def _():
        acc_ref[...] = jnp.zeros_like(acc_ref)

    dwm = dw_ref[...]                       # (9, tk) f32
    a = None
    for t, off in enumerate(taps):          # 9 static row offsets (kh*d*Wp + kw*d)
        tap = x_ref[0, pl.ds(off, m_out), :].astype(jnp.float32)
        if pre_relu:
            tap = jnp.maximum(tap, 0.0)
        contrib = tap * dwm[t:t + 1, :]
        a = contrib if a is None else a + contrib

    acc_ref[...] += jnp.dot(a.astype(jnp.bfloat16), pw_ref[...],
                            preferred_element_type=jnp.float32)

    @pl.when(pl.program_id(1) == pl.num_programs(1) - 1)
    def _():
        y = acc_ref[...] * s_ref[...] + b_ref[...]
        if post_relu:
            y = jnp.maximum(y, 0.0)
        if has_skip:
            y = y + skip_ref[0].astype(jnp.float32)
        o_ref[0] = y.astype(o_ref.dtype)


def _sepconv_fused(x, dw_w, pw_w, dilation, scale, bias, pre_relu, post_relu, skip):
    """Stride-1 SeparableConv2d_same with everything fused into a single pallas_call."""
    N, H, W, Cin = x.shape
    Cout = pw_w.shape[1]
    d = dilation
    Hp, Wp = H + 2 * d, W + 2 * d
    Ho, Wo = H, W
    m_out = Ho * Wp                                   # padded-width row space (junk cols sliced off later)
    flat_rows = _round_up(Hp * Wp + 2 * d, 8)

    Cinp = _round_up(Cin, 128)
    tk = Cinp if Cinp <= 1024 else 512
    Cinp = _round_up(Cinp, tk)
    Coutp = _round_up(Cout, 128)

    xp = jnp.pad(x.astype(jnp.bfloat16), ((0, 0), (d, d), (d, d), (0, Cinp - Cin)))
    xflat = xp.reshape(N, Hp * Wp, Cinp)
    xflat = jnp.pad(xflat, ((0, 0), (0, flat_rows - Hp * Wp), (0, 0)))

    dwm = jnp.pad(dw_w.reshape(9, Cin).astype(jnp.float32), ((0, 0), (0, Cinp - Cin)))
    pwm = jnp.pad(pw_w.astype(jnp.bfloat16), ((0, Cinp - Cin), (0, Coutp - Cout)))
    s_p = jnp.pad(scale.astype(jnp.float32), (0, Coutp - Cout)).reshape(1, Coutp)
    b_p = jnp.pad(bias.astype(jnp.float32), (0, Coutp - Cout)).reshape(1, Coutp)

    taps = tuple((kh * d) * Wp + kw * d for kh in range(3) for kw in range(3))

    inputs = [xflat, dwm, pwm, s_p, b_p]
    in_specs = [
        pl.BlockSpec((1, flat_rows, tk), lambda b, k: (b, 0, k)),
        pl.BlockSpec((9, tk), lambda b, k: (0, k)),
        pl.BlockSpec((tk, Coutp), lambda b, k: (k, 0)),
        pl.BlockSpec((1, Coutp), lambda b, k: (0, 0)),
        pl.BlockSpec((1, Coutp), lambda b, k: (0, 0)),
    ]
    has_skip = skip is not None
    if has_skip:
        sk = jnp.pad(skip.astype(jnp.bfloat16),
                     ((0, 0), (0, 0), (0, Wp - Wo), (0, Coutp - Cout)))
        sk = sk.reshape(N, m_out, Coutp)
        inputs.append(sk)
        in_specs.append(pl.BlockSpec((1, m_out, Coutp), lambda b, k: (b, 0, 0)))

    out = pl.pallas_call(
        functools.partial(_sepconv_kernel, taps=taps, m_out=m_out,
                          pre_relu=pre_relu, post_relu=post_relu, has_skip=has_skip),
        out_shape=jax.ShapeDtypeStruct((N, m_out, Coutp), jnp.bfloat16),
        grid_spec=pltpu.PrefetchScalarGridSpec(
            num_scalar_prefetch=0,
            grid=(N, Cinp // tk),
            in_specs=in_specs,
            out_specs=pl.BlockSpec((1, m_out, Coutp), lambda b, k: (b, 0, 0)),
            scratch_shapes=[pltpu.VMEM((m_out, Coutp), jnp.float32)],
        ),
        compiler_params=pltpu.CompilerParams(
            dimension_semantics=("parallel", "arbitrary"),
            vmem_limit_bytes=_VMEM_LIMIT,
        ),
    )(*inputs)
    out = out[:, :, :Cout].reshape(N, Ho, Wp, Cout)[:, :, :Wo, :]
    return out


def _dw_kernel(x_ref, w_ref, o_ref, *, pre_relu):
    x = x_ref[...].astype(jnp.float32)          # (9, tm, tc)
    if pre_relu:
        x = jnp.maximum(x, 0.0)
    o_ref[...] = jnp.sum(x * w_ref[...], axis=0).astype(o_ref.dtype)


def depthwise_conv(x, w, stride=1, dilation=1, pre_relu=False):
    """Depthwise conv with fixed_padding semantics.  Only used for the 3 stride-2 convs."""
    N, H, W, C = x.shape
    KH, KW, _ = w.shape
    ke = KH + (KH - 1) * (dilation - 1)
    pad_total = ke - 1
    pb = pad_total // 2
    pe = pad_total - pb
    xp = jnp.pad(x, ((0, 0), (pb, pe), (pb, pe), (0, 0)))
    Ho = (H + pad_total - ke) // stride + 1
    Wo = (W + pad_total - ke) // stride + 1
    # TODO(synk): stride!=1 path still materializes the 9-tap stack via JAX strided slices
    # (only 3 such convs in the network); the stride-1 path avoids this entirely.
    taps = []
    for kh in range(KH):
        for kw in range(KW):
            taps.append(
                xp[:, kh * dilation: kh * dilation + (Ho - 1) * stride + 1: stride,
                      kw * dilation: kw * dilation + (Wo - 1) * stride + 1: stride, :])
    T = KH * KW
    M = N * Ho * Wo
    stack = jnp.stack(taps, 0).reshape(T, M, C).astype(jnp.bfloat16)

    Cp = _round_up(C, 128)
    tc = Cp if Cp <= 512 else 256
    Cp = _round_up(Cp, tc)
    Mp = _round_up(M, 8)
    tm = Mp if Mp <= 512 else 512
    Mp = _round_up(Mp, tm)

    stack = jnp.pad(stack, ((0, 0), (0, Mp - M), (0, Cp - C)))
    wm = jnp.pad(w.reshape(T, 1, C).astype(jnp.float32), ((0, 0), (0, 0), (0, Cp - C)))

    out = pl.pallas_call(
        functools.partial(_dw_kernel, pre_relu=pre_relu),
        out_shape=jax.ShapeDtypeStruct((Mp, Cp), jnp.bfloat16),
        grid_spec=pltpu.PrefetchScalarGridSpec(
            num_scalar_prefetch=0,
            grid=(Mp // tm, Cp // tc),
            in_specs=[pl.BlockSpec((T, tm, tc), lambda i, j: (0, i, j)),
                      pl.BlockSpec((T, 1, tc), lambda i, j: (0, 0, j))],
            out_specs=pl.BlockSpec((tm, tc), lambda i, j: (i, j)),
        ),
        compiler_params=pltpu.CompilerParams(
            dimension_semantics=("parallel", "parallel"),
            vmem_limit_bytes=_VMEM_LIMIT,
        ),
    )(stack, wm)
    return out[:M, :C].reshape(N, Ho, Wo, C)


# ---------------------------------------------------------------------------
# Conv wrappers (JAX glue: padding / slicing; compute in Pallas)
# ---------------------------------------------------------------------------
def conv2d(x, w, stride=1, padding=0, dilation=1, scale=None, bias=None, relu=False):
    """Dense conv, NHWC.  w:(KH,KW,Cin,Cout).  BN fused via (scale,bias).  Taps that read only
    zero padding (e.g. large ASPP dilations on small feature maps) are dropped exactly."""
    N, H, W, Cin = x.shape
    KH, KW, _, Cout = w.shape
    if scale is None:
        scale = jnp.ones((Cout,), jnp.float32)
    if bias is None:
        bias = jnp.zeros((Cout,), jnp.float32)
    xp = jnp.pad(x, ((0, 0), (padding, padding), (padding, padding), (0, 0)))
    Hp, Wp = H + 2 * padding, W + 2 * padding
    keh = (KH - 1) * dilation + 1
    kew = (KW - 1) * dilation + 1
    Ho = (Hp - keh) // stride + 1
    Wo = (Wp - kew) // stride + 1

    cols, wrows = [], []
    for kh in range(KH):
        r0 = kh * dilation
        r1 = r0 + (Ho - 1) * stride
        if r1 < padding or r0 >= padding + H:
            continue                                   # tap reads only zero-padded rows
        for kw in range(KW):
            c0 = kw * dilation
            c1 = c0 + (Wo - 1) * stride
            if c1 < padding or c0 >= padding + W:
                continue                               # tap reads only zero-padded cols
            cols.append(xp[:, r0:r1 + 1:stride, c0:c1 + 1:stride, :])
            wrows.append(w[kh, kw])
    a = jnp.concatenate(cols, axis=-1).reshape(N * Ho * Wo, len(cols) * Cin)
    wm = jnp.concatenate(wrows, axis=0)
    out = matmul_bn_act(a, wm, scale, bias, relu=relu)
    return out.reshape(N, Ho, Wo, Cout)


def separable_conv(x, sp, stride=1, dilation=1, scale=None, bias=None,
                   pre_relu=False, post_relu=False, skip=None):
    """SeparableConv2d_same with fused pre-ReLU / BN / post-ReLU / residual add."""
    Cout = sp['pw'].shape[1]
    if scale is None:
        scale = jnp.ones((Cout,), jnp.float32)
    if bias is None:
        bias = jnp.zeros((Cout,), jnp.float32)
    if stride == 1:
        return _sepconv_fused(x, sp['dw'], sp['pw'], dilation, scale, bias,
                              pre_relu, post_relu, skip)
    # stride != 1: gridded depthwise kernel + pointwise matmul with fused epilogue.
    y = depthwise_conv(x, sp['dw'], stride, dilation, pre_relu)
    N, Ho, Wo, C = y.shape
    add2 = skip.reshape(N * Ho * Wo, Cout) if skip is not None else None
    out = matmul_bn_act(y.reshape(N * Ho * Wo, C), sp['pw'], scale, bias,
                        relu=post_relu, add=add2)
    return out.reshape(N, Ho, Wo, Cout)


# TODO(synk): bilinear (align_corners) interpolation and global average pooling are done in
# plain JAX (gather / mean) -- no clean Pallas equivalent for the data-dependent gather.
def _interp_1d(size_in, size_out):
    if size_out == 1:
        src = jnp.zeros((1,), jnp.float32)
    else:
        src = jnp.arange(size_out, dtype=jnp.float32) * (size_in - 1) / (size_out - 1)
    lo = jnp.clip(jnp.floor(src).astype(jnp.int32), 0, max(size_in - 2, 0))
    frac = src - lo.astype(jnp.float32)
    hi = jnp.minimum(lo + 1, size_in - 1)
    return lo, hi, frac


def bilinear_resize(x, oh, ow):
    N, H, W, C = x.shape
    lo_h, hi_h, fh = _interp_1d(H, oh)
    lo_w, hi_w, fw = _interp_1d(W, ow)
    top = x[:, lo_h]
    bot = x[:, hi_h]
    xh = top * (1.0 - fh)[None, :, None, None] + bot * fh[None, :, None, None]
    left = xh[:, :, lo_w]
    right = xh[:, :, hi_w]
    out = left * (1.0 - fw)[None, None, :, None] + right * fw[None, None, :, None]
    return out.astype(x.dtype)


# ---------------------------------------------------------------------------
# Parameters (deterministic synthetic init)
# ---------------------------------------------------------------------------
class KeyGen:
    def __init__(self, seed=0):
        self.key = jax.random.PRNGKey(seed)

    def next(self):
        self.key, sub = jax.random.split(self.key)
        return sub


def bn_params(c):
    gamma = jnp.ones((c,), jnp.float32)
    beta = jnp.zeros((c,), jnp.float32)
    mean = jnp.zeros((c,), jnp.float32)
    var = jnp.ones((c,), jnp.float32)
    scale = gamma / jnp.sqrt(var + EPS)
    bias = beta - mean * scale
    return scale, bias


def conv_w(kg, kh, kw, cin, cout):
    std = math.sqrt(2.0 / (kh * kw * cout))
    return std * jax.random.normal(kg.next(), (kh, kw, cin, cout), jnp.float32)


def dw_conv_w(kg, kh, kw, c):
    std = math.sqrt(2.0 / (kh * kw * c))
    return std * jax.random.normal(kg.next(), (kh, kw, c), jnp.float32)


def make_sep_params(kg, cin, cout):
    return {'dw': dw_conv_w(kg, 3, 3, cin),
            'pw': conv_w(kg, 1, 1, cin, cout).reshape(cin, cout)}


def make_block_params(kg, inplanes, planes, reps, stride=1, dilation=1,
                      start_with_relu=True, grow_first=True, is_last=False):
    p = {'stride': stride}
    if planes != inplanes or stride != 1:
        p['skip_w'] = conv_w(kg, 1, 1, inplanes, planes)
        p['skip_bn'] = bn_params(planes)
    else:
        p['skip_w'] = None
    ops = []
    filters = inplanes
    if grow_first:
        ops.append(('relu',))
        ops.append(('sep_bn', make_sep_params(kg, inplanes, planes), 1, dilation, bn_params(planes)))
        filters = planes
    for _ in range(reps - 1):
        ops.append(('relu',))
        ops.append(('sep_bn', make_sep_params(kg, filters, filters), 1, dilation, bn_params(filters)))
    if not grow_first:
        ops.append(('relu',))
        ops.append(('sep_bn', make_sep_params(kg, inplanes, planes), 1, dilation, bn_params(planes)))
    if not start_with_relu:
        ops = ops[1:]
    if stride != 1:
        ops.append(('sep', make_sep_params(kg, planes, planes), 2, 1))
    if stride == 1 and is_last:
        ops.append(('sep', make_sep_params(kg, planes, planes), 1, 1))
    p['ops'] = ops
    return p


def block_forward(p, x):
    # Residual / skip path first (depends only on the block input), so it can be fused into
    # the epilogue of the block's last separable conv.
    if p['skip_w'] is not None:
        s, b = p['skip_bn']
        skip = conv2d(x, p['skip_w'], stride=p['stride'], padding=0, dilation=1,
                      scale=s, bias=b, relu=False)
    else:
        skip = x

    out = x
    ops = p['ops']
    last = len(ops) - 1
    pending_relu = False
    for idx, op in enumerate(ops):
        if op[0] == 'relu':
            pending_relu = True            # fused as pre-ReLU into the next separable conv
            continue
        if op[0] == 'sep_bn':
            _, sp, stride, dil, (s, b) = op
        else:                              # 'sep'  (no BN, no ReLU)
            _, sp, stride, dil = op
            s = b = None
        out = separable_conv(out, sp, stride=stride, dilation=dil,
                             scale=s, bias=b, pre_relu=pending_relu,
                             post_relu=False,
                             skip=skip if idx == last else None)
        pending_relu = False
    return out


def make_xception_params(kg, inplanes=3, os=16):
    assert os == 16
    p = {}
    p['conv1'] = conv_w(kg, 3, 3, inplanes, 32); p['bn1'] = bn_params(32)
    p['conv2'] = conv_w(kg, 3, 3, 32, 64);        p['bn2'] = bn_params(64)
    p['block1'] = make_block_params(kg, 64, 128, 2, stride=2, start_with_relu=False)
    p['block2'] = make_block_params(kg, 128, 256, 2, stride=2)
    p['block3'] = make_block_params(kg, 256, 728, 2, stride=2, is_last=True)
    p['mid'] = [make_block_params(kg, 728, 728, 3, stride=1, dilation=1) for _ in range(16)]
    p['block20'] = make_block_params(kg, 728, 1024, 2, stride=1, dilation=1,
                                     grow_first=False, is_last=True)
    p['conv3'] = make_sep_params(kg, 1024, 1536); p['bn3'] = bn_params(1536)
    p['conv4'] = make_sep_params(kg, 1536, 1536); p['bn4'] = bn_params(1536)
    p['conv5'] = make_sep_params(kg, 1536, 2048); p['bn5'] = bn_params(2048)
    return p


def xception_forward(p, x):
    s, b = p['bn1']
    x = conv2d(x, p['conv1'], stride=2, padding=1, scale=s, bias=b, relu=True)
    s, b = p['bn2']
    x = conv2d(x, p['conv2'], stride=1, padding=1, scale=s, bias=b, relu=True)
    x = block_forward(p['block1'], x)
    low_level_feat = x
    x = block_forward(p['block2'], x)
    x = block_forward(p['block3'], x)
    for bp in p['mid']:
        x = block_forward(bp, x)
    x = block_forward(p['block20'], x)
    s, b = p['bn3']
    x = separable_conv(x, p['conv3'], stride=1, dilation=2, scale=s, bias=b, post_relu=True)
    s, b = p['bn4']
    x = separable_conv(x, p['conv4'], stride=1, dilation=2, scale=s, bias=b, post_relu=True)
    s, b = p['bn5']
    x = separable_conv(x, p['conv5'], stride=1, dilation=2, scale=s, bias=b, post_relu=True)
    return x, low_level_feat


def make_aspp_params(kg, inplanes=2048, planes=256):
    p = {'dil': [1, 6, 12, 18]}
    p['aspp1'] = (conv_w(kg, 1, 1, inplanes, planes), bn_params(planes))
    p['aspp2'] = (conv_w(kg, 3, 3, inplanes, planes), bn_params(planes))
    p['aspp3'] = (conv_w(kg, 3, 3, inplanes, planes), bn_params(planes))
    p['aspp4'] = (conv_w(kg, 3, 3, inplanes, planes), bn_params(planes))
    p['gap'] = (conv_w(kg, 1, 1, 2048, 256), bn_params(256))
    # note: ASPP_module.conv1/bn1 exist in the PyTorch module but are unused in its forward.
    return p


def aspp_forward(p, x):
    d = p['dil']
    w, (s, b) = p['aspp1']; x1 = conv2d(x, w, 1, 0,    d[0], s, b, relu=True)
    w, (s, b) = p['aspp2']; x2 = conv2d(x, w, 1, d[1], d[1], s, b, relu=True)
    w, (s, b) = p['aspp3']; x3 = conv2d(x, w, 1, d[2], d[2], s, b, relu=True)
    w, (s, b) = p['aspp4']; x4 = conv2d(x, w, 1, d[3], d[3], s, b, relu=True)
    gap = jnp.mean(x, axis=(1, 2), keepdims=True)          # AdaptiveAvgPool2d((1,1))
    w, (s, b) = p['gap']
    x5 = conv2d(gap, w, 1, 0, 1, s, b, relu=True)
    x5 = bilinear_resize(x5, x4.shape[1], x4.shape[2])
    return jnp.concatenate([x1, x2, x3, x4, x5], axis=-1)


def make_deeplab_params(seed=0, nInputChannels=3, n_classes=21):
    kg = KeyGen(seed)
    p = {}
    p['xception'] = make_xception_params(kg, nInputChannels, 16)
    p['aspp'] = make_aspp_params(kg, 2048, 256)
    p['conv1'] = conv_w(kg, 1, 1, 1280, 256); p['bn1'] = bn_params(256)
    p['conv2'] = conv_w(kg, 1, 1, 128, 48);   p['bn2'] = bn_params(48)
    p['lc1'] = conv_w(kg, 3, 3, 304, 256);    p['lc1_bn'] = bn_params(256)
    p['lc2'] = conv_w(kg, 3, 3, 256, 256);    p['lc2_bn'] = bn_params(256)
    p['lc3'] = conv_w(kg, 1, 1, 256, n_classes)
    p['lc3_bias'] = jnp.zeros((n_classes,), jnp.float32)
    return p


def deeplab_forward(p, x_nchw):
    # model boundary: NCHW in / NCHW out, NHWC internally
    x = jnp.transpose(x_nchw, (0, 2, 3, 1)).astype(jnp.float32)
    H_in, W_in = x.shape[1], x.shape[2]

    feats, low = xception_forward(p['xception'], x)
    y = aspp_forward(p['aspp'], feats)

    s, b = p['bn1']
    y = conv2d(y, p['conv1'], 1, 0, 1, s, b, relu=True)
    oh, ow = int(math.ceil(H_in / 4)), int(math.ceil(W_in / 4))
    y = bilinear_resize(y, oh, ow)

    s, b = p['bn2']
    low = conv2d(low, p['conv2'], 1, 0, 1, s, b, relu=True)

    y = jnp.concatenate([y, low], axis=-1)
    s, b = p['lc1_bn']; y = conv2d(y, p['lc1'], 1, 1, 1, s, b, relu=True)
    s, b = p['lc2_bn']; y = conv2d(y, p['lc2'], 1, 1, 1, s, b, relu=True)
    y = conv2d(y, p['lc3'], 1, 0, 1, None, p['lc3_bias'], relu=False)

    y = bilinear_resize(y, H_in, W_in)
    return jnp.transpose(y, (0, 3, 1, 2)).astype(jnp.float32)


if __name__ == "__main__":
    key = jax.random.PRNGKey(0)
    x = jax.random.normal(key, (2, 3, 64, 64), jnp.float32)   # NCHW like the PyTorch module
    params = make_deeplab_params(seed=0, nInputChannels=3, n_classes=21)
    out = deeplab_forward(params, x)
    out = jax.block_until_ready(out)
    assert out.shape == (2, 21, 64, 64), out.shape
    assert bool(jnp.all(jnp.isfinite(out)))
    print("KERNEL_OK")
</pallas_src>

<mosaic_0001>
module attributes {stable_mosaic.version = 11 : i64} {
  func.func @_mm_kernel(%arg0: i32, %arg1: i32, %arg2: i32, %arg3: memref<512x128xbf16, #tpu.memory_space<vmem>>, %arg4: memref<128x128xbf16, #tpu.memory_space<vmem>>, %arg5: memref<1x128xf32, #tpu.memory_space<vmem>>, %arg6: memref<1x128xf32, #tpu.memory_space<vmem>>, %arg7: memref<512x128xbf16, #tpu.memory_space<vmem>>, %arg8: memref<512x128xf32, #tpu.memory_space<vmem>>) attributes {dimension_semantics = [#tpu.dimension_semantics<parallel>, #tpu.dimension_semantics<parallel>, #tpu.dimension_semantics<arbitrary>], iteration_bounds = array<i64: 4, 1, 1>, scalar_prefetch = 0 : i64, scratch_operands = 1 : i64, tpu.core_type = #tpu.core_type<tc>, window_params = [{transform_indices = @transform_0, window_bounds = array<i64: 512, 128>}, {transform_indices = @transform_1, window_bounds = array<i64: 128, 128>}, {transform_indices = @transform_2, window_bounds = array<i64: 1, 128>}, {transform_indices = @transform_3, window_bounds = array<i64: 1, 128>}, {transform_indices = @transform_4, window_bounds = array<i64: 512, 128>}]} {
    %c0_i32 = arith.constant 0 : i32
    %0 = arith.cmpi eq, %arg2, %c0_i32 : i32
    %1 = arith.extui %0 : i1 to i32
    %c0_i32_0 = arith.constant 0 : i32
    %2 = arith.cmpi ne, %1, %c0_i32_0 : i32
    scf.if %2 {
      %cst_10 = arith.constant 0.000000e+00 : f32
      %12 = vector.broadcast %cst_10 : f32 to vector<512x128xf32>
      %c0_11 = arith.constant 0 : index
      %c0_12 = arith.constant 0 : index
      %13 = vector.load %arg8[%c0_11, %c0_12] : memref<512x128xf32, #tpu.memory_space<vmem>>, vector<512x128xf32>
      tpu.vector_store %arg8[%c0_11, %c0_12], %12 {strides = array<i32>} : memref<512x128xf32, #tpu.memory_space<vmem>>, vector<512x128xf32>,
    } else {
    }
    %c0 = arith.constant 0 : index
    %c0_1 = arith.constant 0 : index
    %3 = vector.load %arg8[%c0, %c0_1] : memref<512x128xf32, #tpu.memory_space<vmem>>, vector<512x128xf32>
    %c0_2 = arith.constant 0 : index
    %c0_3 = arith.constant 0 : index
    %4 = vector.load %arg3[%c0_2, %c0_3] : memref<512x128xbf16, #tpu.memory_space<vmem>>, vector<512x128xbf16>
    %c0_4 = arith.constant 0 : index
    %c0_5 = arith.constant 0 : index
    %5 = vector.load %arg4[%c0_4, %c0_5] : memref<128x128xbf16, #tpu.memory_space<vmem>>, vector<128x128xbf16>
    %cst = arith.constant dense<0.000000e+00> : vector<512x128xf32>
    %6 = tpu.matmul %4, %5, %cst {dimension_numbers = #tpu.dot_dimension_numbers<[1], [0], [0], [1], [0, 0, 1, 1], [], []>} : vector<512x128xbf16>, vector<128x128xbf16>, vector<512x128xf32> -> vector<512x128xf32>
    %7 = arith.addf %3, %6 : vector<512x128xf32>
    %c0_6 = arith.constant 0 : index
    %c0_7 = arith.constant 0 : index
    %8 = vector.load %arg8[%c0_6, %c0_7] : memref<512x128xf32, #tpu.memory_space<vmem>>, vector<512x128xf32>
    tpu.vector_store %arg8[%c0_6, %c0_7], %7 {strides = array<i32>} : memref<512x128xf32, #tpu.memory_space<vmem>>, vector<512x128xf32>,
    %c0_i32_8 = arith.constant 0 : i32
    %9 = arith.cmpi eq, %arg2, %c0_i32_8 : i32
    %10 = arith.extui %9 : i1 to i32
    %c0_i32_9 = arith.constant 0 : i32
    %11 = arith.cmpi ne, %10, %c0_i32_9 : i32
    scf.if %11 {
      %c0_10 = arith.constant 0 : index
      %c0_11 = arith.constant 0 : index
      %12 = vector.load %arg8[%c0_10, %c0_11] : memref<512x128xf32, #tpu.memory_space<vmem>>, vector<512x128xf32>
      %c0_12 = arith.constant 0 : index
      %c0_13 = arith.constant 0 : index
      %13 = vector.load %arg5[%c0_12, %c0_13] : memref<1x128xf32, #tpu.memory_space<vmem>>, vector<1x128xf32>
      %14 = vector.broadcast %13 : vector<1x128xf32> to vector<512x128xf32>
      %15 = arith.mulf %12, %14 : vector<512x128xf32>
      %c0_14 = arith.constant 0 : index
      %c0_15 = arith.constant 0 : index
      %16 = vector.load %arg6[%c0_14, %c0_15] : memref<1x128xf32, #tpu.memory_space<vmem>>, vector<1x128xf32>
      %17 = vector.broadcast %16 : vector<1x128xf32> to vector<512x128xf32>
      %18 = arith.addf %15, %17 : vector<512x128xf32>
      %cst_16 = arith.constant 0.000000e+00 : f32
      %19 = vector.broadcast %cst_16 : f32 to vector<512x128xf32>
      %20 = arith.maximumf %18, %19 : vector<512x128xf32>
      %21 = arith.truncf %20 : vector<512x128xf32> to vector<512x128xbf16>
      %c0_17 = arith.constant 0 : index
      %c0_18 = arith.constant 0 : index
      %22 = vector.load %arg7[%c0_17, %c0_18] : memref<512x128xbf16, #tpu.memory_space<vmem>>, vector<512x128xbf16>
      tpu.vector_store %arg7[%c0_17, %c0_18], %21 {strides = array<i32>} : memref<512x128xbf16, #tpu.memory_space<vmem>>, vector<512x128xbf16>,
    } else {
    }
    return
  }
  func.func @transform_0(%arg0: i32, %arg1: i32, %arg2: i32) -> (i32, i32) {
    %c0_i32 = arith.constant 0 : i32
    return %arg0, %arg2 : i32, i32
  }
  func.func @transform_1(%arg0: i32, %arg1: i32, %arg2: i32) -> (i32, i32) {
    %c0_i32 = arith.constant 0 : i32
    return %arg2, %arg1 : i32, i32
  }
  func.func @transform_2(%arg0: i32, %arg1: i32, %arg2: i32) -> (i32, i32) {
    %c0_i32 = arith.constant 0 : i32
    %c0_i32_0 = arith.constant 0 : i32
    return %c0_i32, %arg1 : i32, i32
  }
  func.func @transform_3(%arg0: i32, %arg1: i32, %arg2: i32) -> (i32, i32) {
    %c0_i32 = arith.constant 0 : i32
    %c0_i32_0 = arith.constant 0 : i32
    return %c0_i32, %arg1 : i32, i32
  }
  func.func @transform_4(%arg0: i32, %arg1: i32, %arg2: i32) -> (i32, i32) {
    %c0_i32 = arith.constant 0 : i32
    return %arg0, %arg1 : i32, i32
  }
}

</mosaic_0001>

<llo_original>
// kernel: tpu_custom_call.1
$region0: #{tpu_custom_call.1}
  #allocation0 [shape = 'u32[]', space=smem, size = 0x4, offset = 0x4, fixed_abs, tag = 'smem constant byte address 0x4 - core index']
  #allocation1 [shape = 'u32[144,128]{1,0:T(1,128)}', space=vmem, size = 0x12000, scoped, tag = 'internal scratch']
  #allocation2 [shape = 'f32[512,128]{1,0:T(8,128)}', space=vmem, size = 0x40000, scoped, tag = 'scratch operand']
  %s0 = inlined_call_operand.hbm [shape: bf16[2048,128], index: 0, kind: input, shape index: {}]
  %s1 = inlined_call_operand.hbm [shape: bf16[128,128], index: 1, kind: input, shape index: {}]
  %s2 = inlined_call_operand.vmem [shape: f32[1,128], index: 2, kind: input, shape index: {}]
  %s3 = inlined_call_operand.vmem [shape: f32[1,128], index: 3, kind: input, shape index: {}]
  %s4 = inlined_call_operand.hbm [shape: bf16[2048,128], index: 4, kind: output, shape index: {}]
  %s5 = sld [smem:[#allocation0]]
  $region65: #{tpu_custom_call.1} parent=0
    _
  %s7 = ssub.s32 1, %s5
  %s8 = scalar_select 0, %s7, %s5
  $region1: #{tpu_custom_call.1} parent=0
    #allocation3 [shape = 'u8[262144]{0}', space=vmem, size = 0x40000, scoped, tag = 'input window, operand 0']
    #allocation4 [shape = 's32[2]{0}', space=sflag, size = 0x8, scoped, tag = 'scoped memory for tpu_custom_call.1']
    #allocation5 [shape = 's32[2]{0}', space=sflag, size = 0x8, scoped, tag = 'scoped memory for tpu_custom_call.1']
    #allocation6 [shape = 'u8[32768]{0}', space=vmem, size = 0x8000, scoped, tag = 'input window, operand 1, single buffered']
    #allocation7 [shape = 's32[1]{0}', space=sflag, size = 0x4, scoped, tag = 'scoped memory for tpu_custom_call.1']
    #allocation8 [shape = 'u8[262144]{0}', space=vmem, size = 0x40000, scoped, tag = 'output window, operand 0']
    %9 = vsyncpa [#allocation4], 0
    %s10 = scalar_lea.sflag [#allocation4], 1
    %11 = vsyncpa %s10, 0
    %12 = vsyncpa [#allocation7], 0
    %13 = vsyncpa [#allocation5], 0
    %s14 = scalar_lea.sflag [#allocation5], 1
    %15 = vsyncpa %s14, 0
    loop: start=0, step=1, limit=6
    $region2: #{tpu_custom_call.1} parent=1 // loop_pre_header
      _
    $region3: #{tpu_custom_call.1} parent=1 // loop_header
      %s17 = sphi 0, %s21
      %p18 = scmp.ge.s32.totalorder %s17, 6
      %s24 = sphi 0, %s43
      %s25 = sphi 0, %s39
      %s26 = sphi 0, %s35
      %s27 = sphi 0, %s24
      %s28 = sphi 0, %s25
      %s29 = sphi 0, %s26
      %s30 = sphi 0, %s27
      %s31 = sphi 0, %s28
      %s32 = sphi 0, %s29
      %s48 = sphi 0, %s50
      %s51 = sphi 0, %s48
      %s52 = sphi 0, %s51
      %s68 = sphi 0, %s52
      %s76 = sphi 0, %s78
      %s79 = sphi 0, %s76
      %s80 = sphi 0, %s79
      %s96 = sphi 0, %s80
      %s102 = sphi 0, %s104
      %s105 = sphi 0, %s102
      %s106 = sphi 0, %s105
      %s122 = sphi 0, %s106
      %s128 = sphi 0, %s130
      %s131 = sphi 0, %s128
      %s132 = sphi 0, %s131
      %s148 = sphi 0, %s132
      %s156 = sphi 0, %s158
      %s159 = sphi 0, %s156
      %s160 = sphi 0, %s159
      %s176 = sphi 0, %s160
    $region4: #{tpu_custom_call.1} parent=1 // loop_header_branch
      %20 = sbr.rel (%p18) target = $region8
    $region5: #{tpu_custom_call.1} parent=1 // loop_body
      %s22 = ssub.s32 %s17, 1
      %s23 = ssub.s32 %s17, 2
      %s33 = sadd.s32 1, %s26
      %p34 = scmp.ge.s32.totalorder %s33, 1
      %s35 = scalar_select %p34, 0, %s33
      %s36 = sadd.s32 1, %s25
      %s37 = scalar_select %p34, %s36, %s25
      %p38 = scmp.ge.s32.totalorder %s37, 1
      %s39 = scalar_select %p38, 0, %s37
      %s40 = sadd.s32 1, %s24
      %s41 = scalar_select %p38, %s40, %s24
      %p42 = scmp.ge.s32.totalorder %s41, 4
      %s43 = scalar_select %p42, 0, %s41
      %s44 = ssub.s32 %s24, %s43
      %s45 = ssub.s32 %s26, %s35
      %s46 = sor.u32 %s44, %s45
      %p47 = scmp.eq.s32.totalorder %s46, 0
      %s49 = sadd.s32 %s48, 1
      %s50 = scalar_select %p47, %s48, %s49
      %p53 = pneg %p47
      %p54 = scmp.eq.s32.totalorder %s17, 3
      %p55 = por %p53, %p54
      %p56 = scmp.ne.s32.totalorder %s48, %s51
      %p57 = scmp.eq.s32.totalorder %s17, 0
      %p58 = por %p56, %p57
      %p59 = scmp.ne.s32.totalorder %s48, %s51
      %p60 = scmp.eq.s32.totalorder %s22, 3
      %p61 = por %p59, %p60
      %p62 = scmp.ne.s32.totalorder %s51, %s52
      %p63 = scmp.eq.s32.totalorder %s22, 0
      %p64 = por %p62, %p63
      %p65 = scmp.ne.s32.totalorder %s51, %s52
      %p66 = scmp.eq.s32.totalorder %s23, 3
      %p67 = por %p65, %p66
      %p69 = scmp.ne.s32.totalorder %s52, %s68
      %p70 = scmp.eq.s32.totalorder %s23, 0
      %p71 = por %p69, %p70
      %s72 = ssub.s32 %s26, %s35
      %s73 = ssub.s32 %s25, %s39
      %s74 = sor.u32 %s72, %s73
      %p75 = scmp.eq.s32.totalorder %s74, 0
      %s77 = sadd.s32 %s76, 1
      %s78 = scalar_select %p75, %s76, %s77
      %p81 = pneg %p75
      %p82 = scmp.eq.s32.totalorder %s17, 3
      %p83 = por %p81, %p82
      %p84 = scmp.ne.s32.totalorder %s76, %s79
      %p85 = scmp.eq.s32.totalorder %s17, 0
      %p86 = por %p84, %p85
      %p87 = scmp.ne.s32.totalorder %s76, %s79
      %p88 = scmp.eq.s32.totalorder %s22, 3
      %p89 = por %p87, %p88
      %p90 = scmp.ne.s32.totalorder %s79, %s80
      %p91 = scmp.eq.s32.totalorder %s22, 0
      %p92 = por %p90, %p91
      %p93 = scmp.ne.s32.totalorder %s79, %s80
      %p94 = scmp.eq.s32.totalorder %s23, 3
      %p95 = por %p93, %p94
      %p97 = scmp.ne.s32.totalorder %s80, %s96
      %p98 = scmp.eq.s32.totalorder %s23, 0
      %p99 = por %p97, %p98
      %s100 = ssub.s32 %s25, %s39
      %p101 = scmp.eq.s32.totalorder %s100, 0
      %s103 = sadd.s32 %s102, 1
      %s104 = scalar_select %p101, %s102, %s103
      %p107 = pneg %p101
      %p108 = scmp.eq.s32.totalorder %s17, 3
      %p109 = por %p107, %p108
      %p110 = scmp.ne.s32.totalorder %s102, %s105
      %p111 = scmp.eq.s32.totalorder %s17, 0
      %p112 = por %p110, %p111
      %p113 = scmp.ne.s32.totalorder %s102, %s105
      %p114 = scmp.eq.s32.totalorder %s22, 3
      %p115 = por %p113, %p114
      %p116 = scmp.ne.s32.totalorder %s105, %s106
      %p117 = scmp.eq.s32.totalorder %s22, 0
      %p118 = por %p116, %p117
      %p119 = scmp.ne.s32.totalorder %s105, %s106
      %p120 = scmp.eq.s32.totalorder %s23, 3
      %p121 = por %p119, %p120
      %p123 = scmp.ne.s32.totalorder %s106, %s122
      %p124 = scmp.eq.s32.totalorder %s23, 0
      %p125 = por %p123, %p124
      %s126 = ssub.s32 %s25, %s39
      %p127 = scmp.eq.s32.totalorder %s126, 0
      %s129 = sadd.s32 %s128, 1
      %s130 = scalar_select %p127, %s128, %s129
      %p133 = pneg %p127
      %p134 = scmp.eq.s32.totalorder %s17, 3
      %p135 = por %p133, %p134
      %p136 = scmp.ne.s32.totalorder %s128, %s131
      %p137 = scmp.eq.s32.totalorder %s17, 0
      %p138 = por %p136, %p137
      %p139 = scmp.ne.s32.totalorder %s128, %s131
      %p140 = scmp.eq.s32.totalorder %s22, 3
      %p141 = por %p139, %p140
      %p142 = scmp.ne.s32.totalorder %s131, %s132
      %p143 = scmp.eq.s32.totalorder %s22, 0
      %p144 = por %p142, %p143
      %p145 = scmp.ne.s32.totalorder %s131, %s132
      %p146 = scmp.eq.s32.totalorder %s23, 3
      %p147 = por %p145, %p146
      %p149 = scmp.ne.s32.totalorder %s132, %s148
      %p150 = scmp.eq.s32.totalorder %s23, 0
      %p151 = por %p149, %p150
      %s152 = ssub.s32 %s24, %s43
      %s153 = ssub.s32 %s25, %s39
      %s154 = sor.u32 %s152, %s153
      %p155 = scmp.eq.s32.totalorder %s154, 0
      %s157 = sadd.s32 %s156, 1
      %s158 = scalar_select %p155, %s156, %s157
      %p161 = pneg %p155
      %p162 = scmp.eq.s32.totalorder %s17, 3
      %p163 = por %p161, %p162
      %p164 = scmp.ne.s32.totalorder %s156, %s159
      %p165 = scmp.eq.s32.totalorder %s17, 0
      %p166 = por %p164, %p165
      %p167 = scmp.ne.s32.totalorder %s156, %s159
      %p168 = scmp.eq.s32.totalorder %s22, 3
      %p169 = por %p167, %p168
      %p170 = scmp.ne.s32.totalorder %s159, %s160
      %p171 = scmp.eq.s32.totalorder %s22, 0
      %p172 = por %p170, %p171
      %p173 = scmp.ne.s32.totalorder %s159, %s160
      %p174 = scmp.eq.s32.totalorder %s23, 3
      %p175 = por %p173, %p174
      %p177 = scmp.ne.s32.totalorder %s160, %s176
      %p178 = scmp.eq.s32.totalorder %s23, 0
      %p179 = por %p177, %p178
      %p180 = scmp.le.s32.totalorder 1, %s17
      %p181 = scmp.lt.s32.totalorder %s17, 5
      %p182 = pnand %p180, %p181
      %p183 = pneg %p182
      // Predicated region
      $region9: #{tpu_custom_call.1} parent=5 // pred_check
        _
      $region10: #{tpu_custom_call.1} parent=5 // pred_check_branch
        %185 = sbr.rel (%p182) target = $region12
      $region11: #{tpu_custom_call.1} parent=5 // pred_region
        %s186 = ssub.s32 %s17, 1
        // Predicated region
        $region13: #{tpu_custom_call.1} parent=11 // pred_check
          %p187 = pneg %p92
        $region14: #{tpu_custom_call.1} parent=11 // pred_check_branch
          %189 = sbr.rel (%p187) target = $region16
        $region15: #{tpu_custom_call.1} parent=11 // pred_region
          %s190 = smul.u32 16, %s29
          %s192 = ssub.s32 1024, 1024
          %193 = vsyncadd [#allocation7], %s192
          %s194 = sadd.s32 %s28, %s190
          %s195 = smul.addr %s194, 64
          %s196 = scalar_lea.hbm %s1, %s195
          %s197 = sshll.u32 [#allocation6], 4
          %s198 = int_to_ptr.vmem [resolvable:$true] %s197
          %203 = dma.hbm_to_vmem [thread:$0]  %s196, 1024, %s198, [#allocation7], 64, 64, 4
        $region16: #{tpu_custom_call.1} parent=11 // pred_fallthru
          _
        // Predicated region
        $region17: #{tpu_custom_call.1} parent=11 // pred_check
          %p204 = pneg %p118
        $region18: #{tpu_custom_call.1} parent=11 // pred_check_branch
          %206 = sbr.rel (%p204) target = $region20
        $region19: #{tpu_custom_call.1} parent=11 // pred_region
          %p207 = scmp.lt.s32.totalorder %s28, 0
          %s208 = scalar_select %p207, %s28, 0
          %s209 = scalar_lea.vmem %s2, %s208
        $region20: #{tpu_custom_call.1} parent=11 // pred_fallthru
          _
        // Predicated region
        $region21: #{tpu_custom_call.1} parent=11 // pred_check
          %p210 = pneg %p144
        $region22: #{tpu_custom_call.1} parent=11 // pred_check_branch
          %212 = sbr.rel (%p210) target = $region24
        $region23: #{tpu_custom_call.1} parent=11 // pred_region
          %p213 = scmp.lt.s32.totalorder %s28, 0
          %s214 = scalar_select %p213, %s28, 0
          %s215 = scalar_lea.vmem %s3, %s214
        $region24: #{tpu_custom_call.1} parent=11 // pred_fallthru
          _
      $region12: #{tpu_custom_call.1} parent=5 // pred_fallthru
        _
      %p216 = scmp.lt.s32.totalorder %s17, 4
      // Predicated region
      $region25: #{tpu_custom_call.1} parent=5 // pred_check
        %p217 = pneg %p216
      $region26: #{tpu_custom_call.1} parent=5 // pred_check_branch
        %219 = sbr.rel (%p217) target = $region28
      $region27: #{tpu_custom_call.1} parent=5 // pred_region
        // Predicated region
        $region29: #{tpu_custom_call.1} parent=27 // pred_check
          %p220 = pneg %p58
        $region30: #{tpu_custom_call.1} parent=27 // pred_check_branch
          %222 = sbr.rel (%p220) target = $region32
        $region31: #{tpu_custom_call.1} parent=27 // pred_region
          %s223 = sand.u32 %s48, 1
          %s224 = scalar_lea.sflag [#allocation4], %s223
          %s225 = sand.u32 %s48, 1
          %s226 = smul.addr %s225, 256
          %s227 = scalar_lea.vmem [#allocation3], %s226
          %s228 = smul.u32 64, %s24
          %s230 = ssub.s32 4096, 4096
          %231 = vsyncadd %s224, %s230
          %s232 = sadd.s32 %s26, %s228
          %s233 = smul.addr %s232, 64
          %s234 = scalar_lea.hbm %s0, %s233
          %s235 = sshll.u32 %s227, 4
          %s236 = int_to_ptr.vmem [resolvable:$true] %s235
          %241 = dma.hbm_to_vmem [thread:$0]  %s234, 4096, %s236, %s224, 64, 64, 4
        $region32: #{tpu_custom_call.1} parent=27 // pred_fallthru
          _
      $region28: #{tpu_custom_call.1} parent=5 // pred_fallthru
        _
      %p242 = scmp.le.s32.totalorder 1, %s17
      %p243 = scmp.lt.s32.totalorder %s17, 5
      %p244 = pnand %p242, %p243
      %p245 = pneg %p244
      // Predicated region
      $region33: #{tpu_custom_call.1} parent=5 // pred_check
        _
      $region34: #{tpu_custom_call.1} parent=5 // pred_check_branch
        %247 = sbr.rel (%p244) target = $region36
      $region35: #{tpu_custom_call.1} parent=5 // pred_region
        %s248 = ssub.s32 %s17, 1
        %s249 = sand.u32 %s51, 1
        %s250 = scalar_lea.sflag [#allocation4], %s249
        %s251 = sand.u32 %s51, 1
        %s252 = smul.addr %s251, 256
        %s253 = scalar_lea.vmem [#allocation3], %s252
        // Predicated region
        $region37: #{tpu_custom_call.1} parent=35 // pred_check
          %p254 = pneg %p64
        $region38: #{tpu_custom_call.1} parent=35 // pred_check_branch
          %256 = sbr.rel (%p254) target = $region40
        $region39: #{tpu_custom_call.1} parent=35 // pred_region
          %257 = dma.done %s250, 4096
        $region40: #{tpu_custom_call.1} parent=35 // pred_fallthru
          _
        // Predicated region
        $region41: #{tpu_custom_call.1} parent=35 // pred_check
          %p258 = pneg %p92
        $region42: #{tpu_custom_call.1} parent=35 // pred_check_branch
          %260 = sbr.rel (%p258) target = $region44
        $region43: #{tpu_custom_call.1} parent=35 // pred_region
          %261 = dma.done [#allocation7], 1024
        $region44: #{tpu_custom_call.1} parent=35 // pred_fallthru
          _
        %s262 = sand.u32 %s51, 1
        %s263 = scalar_lea.sflag [#allocation4], %s262
        %s264 = sand.u32 %s51, 1
        %s265 = smul.addr %s264, 256
        %s266 = scalar_lea.vmem [#allocation3], %s265
        %p267 = pneg %p64
        %p268 = pneg %p61
        %p269 = pneg %p92
        %p270 = pneg %p89
        %p271 = scmp.lt.s32.totalorder %s28, 0
        %s272 = scalar_select %p271, %s28, 0
        %s273 = scalar_lea.vmem %s2, %s272
        %p274 = pneg %p118
        %p275 = pneg %p115
        %p276 = scmp.lt.s32.totalorder %s28, 0
        %s277 = scalar_select %p276, %s28, 0
        %s278 = scalar_lea.vmem %s3, %s277
        %p279 = pneg %p144
        %p280 = pneg %p141
        %p281 = pneg %p172
        %p282 = pneg %p169
        %s283 = sand.u32 %s159, 1
        %s284 = scalar_lea.sflag [#allocation5], %s283
        %s285 = sand.u32 %s159, 1
        %s286 = smul.addr %s285, 256
        %s287 = scalar_lea.vmem [#allocation8], %s286
        %s288 = smul.u32 64, %s27
        %s289 = smul.u32 16, %s29
        %p290 = scmp.lt.s32.totalorder %s28, 0
        %s291 = scalar_select %p290, %s28, 0
        %s292 = scalar_lea.vmem %s2, %s291
        %p293 = scmp.lt.s32.totalorder %s28, 0
        %s294 = scalar_select %p293, %s28, 0
        %s295 = scalar_lea.vmem %s3, %s294
        %s296 = smul.u32 64, %s27
        %p298 = scmp.eq.s32.totalorder %s29, 0
        // Predicated region
        $region45: #{tpu_custom_call.1} parent=35 // pred_check
          %p299 = pneg %p298
        $region46: #{tpu_custom_call.1} parent=35 // pred_check_branch
          %301 = sbr.rel (%p299) target = $region48
        $region47: #{tpu_custom_call.1} parent=35 // pred_region
          %302 = vst [vmem:[#allocation2] sm:$0xff] 0.0
          %303 = vst [vmem:[#allocation2 + $0x8] sm:$0xff] 0.0
          %304 = vst [vmem:[#allocation2 + $0x10] sm:$0xff] 0.0
          %305 = vst [vmem:[#allocation2 + $0x18] sm:$0xff] 0.0
          %306 = vst [vmem:[#allocation2 + $0x20] sm:$0xff] 0.0
          %307 = vst [vmem:[#allocation2 + $0x28] sm:$0xff] 0.0
          %308 = vst [vmem:[#allocation2 + $0x30] sm:$0xff] 0.0
          %309 = vst [vmem:[#allocation2 + $0x38] sm:$0xff] 0.0
          %310 = vst [vmem:[#allocation2 + $0x40] sm:$0xff] 0.0
          %311 = vst [vmem:[#allocation2 + $0x48] sm:$0xff] 0.0
          %312 = vst [vmem:[#allocation2 + $0x50] sm:$0xff] 0.0
          %313 = vst [vmem:[#allocation2 + $0x58] sm:$0xff] 0.0
          %314 = vst [vmem:[#allocation2 + $0x60] sm:$0xff] 0.0
          %315 = vst [vmem:[#allocation2 + $0x68] sm:$0xff] 0.0
          %316 = vst [vmem:[#allocation2 + $0x70] sm:$0xff] 0.0
          %317 = vst [vmem:[#allocation2 + $0x78] sm:$0xff] 0.0
          %318 = vst [vmem:[#allocation2 + $0x80] sm:$0xff] 0.0
          %319 = vst [vmem:[#allocation2 + $0x88] sm:$0xff] 0.0
          %320 = vst [vmem:[#allocation2 + $0x90] sm:$0xff] 0.0
          %321 = vst [vmem:[#allocation2 + $0x98] sm:$0xff] 0.0
          %322 = vst [vmem:[#allocation2 + $0xa0] sm:$0xff] 0.0
          %323 = vst [vmem:[#allocation2 + $0xa8] sm:$0xff] 0.0
          %324 = vst [vmem:[#allocation2 + $0xb0] sm:$0xff] 0.0
          %325 = vst [vmem:[#allocation2 + $0xb8] sm:$0xff] 0.0
          %326 = vst [vmem:[#allocation2 + $0xc0] sm:$0xff] 0.0
          %327 = vst [vmem:[#allocation2 + $0xc8] sm:$0xff] 0.0
          %328 = vst [vmem:[#allocation2 + $0xd0] sm:$0xff] 0.0
          %329 = vst [vmem:[#allocation2 + $0xd8] sm:$0xff] 0.0
          %330 = vst [vmem:[#allocation2 + $0xe0] sm:$0xff] 0.0
          %331 = vst [vmem:[#allocation2 + $0xe8] sm:$0xff] 0.0
          %332 = vst [vmem:[#allocation2 + $0xf0] sm:$0xff] 0.0
          %333 = vst [vmem:[#allocation2 + $0xf8] sm:$0xff] 0.0
          %334 = vst [vmem:[#allocation2 + $0x100] sm:$0xff] 0.0
          %335 = vst [vmem:[#allocation2 + $0x108] sm:$0xff] 0.0
          %336 = vst [vmem:[#allocation2 + $0x110] sm:$0xff] 0.0
          %337 = vst [vmem:[#allocation2 + $0x118] sm:$0xff] 0.0
          %338 = vst [vmem:[#allocation2 + $0x120] sm:$0xff] 0.0
          %339 = vst [vmem:[#allocation2 + $0x128] sm:$0xff] 0.0
          %340 = vst [vmem:[#allocation2 + $0x130] sm:$0xff] 0.0
          %341 = vst [vmem:[#allocation2 + $0x138] sm:$0xff] 0.0
          %342 = vst [vmem:[#allocation2 + $0x140] sm:$0xff] 0.0
          %343 = vst [vmem:[#allocation2 + $0x148] sm:$0xff] 0.0
          %344 = vst [vmem:[#allocation2 + $0x150] sm:$0xff] 0.0
          %345 = vst [vmem:[#allocation2 + $0x158] sm:$0xff] 0.0
          %346 = vst [vmem:[#allocation2 + $0x160] sm:$0xff] 0.0
          %347 = vst [vmem:[#allocation2 + $0x168] sm:$0xff] 0.0
          %348 = vst [vmem:[#allocation2 + $0x170] sm:$0xff] 0.0
          %349 = vst [vmem:[#allocation2 + $0x178] sm:$0xff] 0.0
          %350 = vst [vmem:[#allocation2 + $0x180] sm:$0xff] 0.0
          %351 = vst [vmem:[#allocation2 + $0x188] sm:$0xff] 0.0
          %352 = vst [vmem:[#allocation2 + $0x190] sm:$0xff] 0.0
          %353 = vst [vmem:[#allocation2 + $0x198] sm:$0xff] 0.0
          %354 = vst [vmem:[#allocation2 + $0x1a0] sm:$0xff] 0.0
          %355 = vst [vmem:[#allocation2 + $0x1a8] sm:$0xff] 0.0
          %356 = vst [vmem:[#allocation2 + $0x1b0] sm:$0xff] 0.0
          %357 = vst [vmem:[#allocation2 + $0x1b8] sm:$0xff] 0.0
          %358 = vst [vmem:[#allocation2 + $0x1c0] sm:$0xff] 0.0
          %359 = vst [vmem:[#allocation2 + $0x1c8] sm:$0xff] 0.0
          %360 = vst [vmem:[#allocation2 + $0x1d0] sm:$0xff] 0.0
          %361 = vst [vmem:[#allocation2 + $0x1d8] sm:$0xff] 0.0
          %362 = vst [vmem:[#allocation2 + $0x1e0] sm:$0xff] 0.0
          %363 = vst [vmem:[#allocation2 + $0x1e8] sm:$0xff] 0.0
          %364 = vst [vmem:[#allocation2 + $0x1f0] sm:$0xff] 0.0
          %365 = vst [vmem:[#allocation2 + $0x1f8] sm:$0xff] 0.0
        $region48: #{tpu_custom_call.1} parent=35 // pred_fallthru
          _
        %v366 = vld [vmem:[#allocation2] sm:$0xff]
        %v367 = vld [vmem:[#allocation2 + $0x8] sm:$0xff]
        %v368 = vld [vmem:[#allocation2 + $0x10] sm:$0xff]
        %v369 = vld [vmem:[#allocation2 + $0x18] sm:$0xff]
        %v370 = vld [vmem:[#allocation2 + $0x20] sm:$0xff]
        %v371 = vld [vmem:[#allocation2 + $0x28] sm:$0xff]
        %v372 = vld [vmem:[#allocation2 + $0x30] sm:$0xff]
        %v373 = vld [vmem:[#allocation2 + $0x38] sm:$0xff]
        %v374 = vld [vmem:[#allocation2 + $0x40] sm:$0xff]
        %v375 = vld [vmem:[#allocation2 + $0x48] sm:$0xff]
        %v376 = vld [vmem:[#allocation2 + $0x50] sm:$0xff]
        %v377 = vld [vmem:[#allocation2 + $0x58] sm:$0xff]
        %v378 = vld [vmem:[#allocation2 + $0x60] sm:$0xff]
        %v379 = vld [vmem:[#allocation2 + $0x68] sm:$0xff]
        %v380 = vld [vmem:[#allocation2 + $0x70] sm:$0xff]
        %v381 = vld [vmem:[#allocation2 + $0x78] sm:$0xff]
        %v382 = vld [vmem:[#allocation2 + $0x80] sm:$0xff]
        %v383 = vld [vmem:[#allocation2 + $0x88] sm:$0xff]
        %v384 = vld [vmem:[#allocation2 + $0x90] sm:$0xff]
        %v385 = vld [vmem:[#allocation2 + $0x98] sm:$0xff]
        %v386 = vld [vmem:[#allocation2 + $0xa0] sm:$0xff]
        %v387 = vld [vmem:[#allocation2 + $0xa8] sm:$0xff]
        %v388 = vld [vmem:[#allocation2 + $0xb0] sm:$0xff]
        %v389 = vld [vmem:[#allocation2 + $0xb8] sm:$0xff]
        %v390 = vld [vmem:[#allocation2 + $0xc0] sm:$0xff]
        %v391 = vld [vmem:[#allocation2 + $0xc8] sm:$0xff]
        %v392 = vld [vmem:[#allocation2 + $0xd0] sm:$0xff]
        %v393 = vld [vmem:[#allocation2 + $0xd8] sm:$0xff]
        %v394 = vld [vmem:[#allocation2 + $0xe0] sm:$0xff]
        %v395 = vld [vmem:[#allocation2 + $0xe8] sm:$0xff]
        %v396 = vld [vmem:[#allocation2 + $0xf0] sm:$0xff]
        %v397 = vld [vmem:[#allocation2 + $0xf8] sm:$0xff]
        %v398 = vld [vmem:[#allocation2 + $0x100] sm:$0xff]
        %v399 = vld [vmem:[#allocation2 + $0x108] sm:$0xff]
        %v400 = vld [vmem:[#allocation2 + $0x110] sm:$0xff]
        %v401 = vld [vmem:[#allocation2 + $0x118] sm:$0xff]
        %v402 = vld [vmem:[#allocation2 + $0x120] sm:$0xff]
        %v403 = vld [vmem:[#allocation2 + $0x128] sm:$0xff]
        %v404 = vld [vmem:[#allocation2 + $0x130] sm:$0xff]
        %v405 = vld [vmem:[#allocation2 + $0x138] sm:$0xff]
        %v406 = vld [vmem:[#allocation2 + $0x140] sm:$0xff]
        %v407 = vld [vmem:[#allocation2 + $0x148] sm:$0xff]
        %v408 = vld [vmem:[#allocation2 + $0x150] sm:$0xff]
        %v409 = vld [vmem:[#allocation2 + $0x158] sm:$0xff]
        %v410 = vld [vmem:[#allocation2 + $0x160] sm:$0xff]
        %v411 = vld [vmem:[#allocation2 + $0x168] sm:$0xff]
        %v412 = vld [vmem:[#allocation2 + $0x170] sm:$0xff]
        %v413 = vld [vmem:[#allocation2 + $0x178] sm:$0xff]
        %v414 = vld [vmem:[#allocation2 + $0x180] sm:$0xff]
        %v415 = vld [vmem:[#allocation2 + $0x188] sm:$0xff]
        %v416 = vld [vmem:[#allocation2 + $0x190] sm:$0xff]
        %v417 = vld [vmem:[#allocation2 + $0x198] sm:$0xff]
        %v418 = vld [vmem:[#allocation2 + $0x1a0] sm:$0xff]
        %v419 = vld [vmem:[#allocation2 + $0x1a8] sm:$0xff]
        %v420 = vld [vmem:[#allocation2 + $0x1b0] sm:$0xff]
        %v421 = vld [vmem:[#allocation2 + $0x1b8] sm:$0xff]
        %v422 = vld [vmem:[#allocation2 + $0x1c0] sm:$0xff]
        %v423 = vld [vmem:[#allocation2 + $0x1c8] sm:$0xff]
        %v424 = vld [vmem:[#allocation2 + $0x1d0] sm:$0xff]
        %v425 = vld [vmem:[#allocation2 + $0x1d8] sm:$0xff]
        %v426 = vld [vmem:[#allocation2 + $0x1e0] sm:$0xff]
        %v427 = vld [vmem:[#allocation2 + $0x1e8] sm:$0xff]
        %v428 = vld [vmem:[#allocation2 + $0x1f0] sm:$0xff]
        %v429 = vld [vmem:[#allocation2 + $0x1f8] sm:$0xff]
        %v430 = vld [vmem:[%s253] sm:$0xf]
        %v431 = vld [vmem:[%s253 + $0x4] sm:$0xf]
        %v432 = vld [vmem:[%s253 + $0x8] sm:$0xf]
        %v433 = vld [vmem:[%s253 + $0xc] sm:$0xf]
        %v434 = vld [vmem:[%s253 + $0x10] sm:$0xf]
        %v435 = vld [vmem:[%s253 + $0x14] sm:$0xf]
        %v436 = vld [vmem:[%s253 + $0x18] sm:$0xf]
        %v437 = vld [vmem:[%s253 + $0x1c] sm:$0xf]
        %v438 = vld [vmem:[%s253 + $0x20] sm:$0xf]
        %v439 = vld [vmem:[%s253 + $0x24] sm:$0xf]
        %v440 = vld [vmem:[%s253 + $0x28] sm:$0xf]
        %v441 = vld [vmem:[%s253 + $0x2c] sm:$0xf]
        %v442 = vld [vmem:[%s253 + $0x30] sm:$0xf]
        %v443 = vld [vmem:[%s253 + $0x34] sm:$0xf]
        %v444 = vld [vmem:[%s253 + $0x38] sm:$0xf]
        %v445 = vld [vmem:[%s253 + $0x3c] sm:$0xf]
        %v446 = vld [vmem:[%s253 + $0x40] sm:$0xf]
        %v447 = vld [vmem:[%s253 + $0x44] sm:$0xf]
        %v448 = vld [vmem:[%s253 + $0x48] sm:$0xf]
        %v449 = vld [vmem:[%s253 + $0x4c] sm:$0xf]
        %v450 = vld [vmem:[%s253 + $0x50] sm:$0xf]
        %v451 = vld [vmem:[%s253 + $0x54] sm:$0xf]
        %v452 = vld [vmem:[%s253 + $0x58] sm:$0xf]
        %v453 = vld [vmem:[%s253 + $0x5c] sm:$0xf]
        %v454 = vld [vmem:[%s253 + $0x60] sm:$0xf]
        %v455 = vld [vmem:[%s253 + $0x64] sm:$0xf]
        %v456 = vld [vmem:[%s253 + $0x68] sm:$0xf]
        %v457 = vld [vmem:[%s253 + $0x6c] sm:$0xf]
        %v458 = vld [vmem:[%s253 + $0x70] sm:$0xf]
        %v459 = vld [vmem:[%s253 + $0x74] sm:$0xf]
        %v460 = vld [vmem:[%s253 + $0x78] sm:$0xf]
        %v461 = vld [vmem:[%s253 + $0x7c] sm:$0xf]
        %v462 = vld [vmem:[%s253 + $0x80] sm:$0xf]
        %v463 = vld [vmem:[%s253 + $0x84] sm:$0xf]
        %v464 = vld [vmem:[%s253 + $0x88] sm:$0xf]
        %v465 = vld [vmem:[%s253 + $0x8c] sm:$0xf]
        %v466 = vld [vmem:[%s253 + $0x90] sm:$0xf]
        %v467 = vld [vmem:[%s253 + $0x94] sm:$0xf]
        %v468 = vld [vmem:[%s253 + $0x98] sm:$0xf]
        %v469 = vld [vmem:[%s253 + $0x9c] sm:$0xf]
        %v470 = vld [vmem:[%s253 + $0xa0] sm:$0xf]
        %v471 = vld [vmem:[%s253 + $0xa4] sm:$0xf]
        %v472 = vld [vmem:[%s253 + $0xa8] sm:$0xf]
        %v473 = vld [vmem:[%s253 + $0xac] sm:$0xf]
        %v474 = vld [vmem:[%s253 + $0xb0] sm:$0xf]
        %v475 = vld [vmem:[%s253 + $0xb4] sm:$0xf]
        %v476 = vld [vmem:[%s253 + $0xb8] sm:$0xf]
        %v477 = vld [vmem:[%s253 + $0xbc] sm:$0xf]
        %v478 = vld [vmem:[%s253 + $0xc0] sm:$0xf]
        %v479 = vld [vmem:[%s253 + $0xc4] sm:$0xf]
        %v480 = vld [vmem:[%s253 + $0xc8] sm:$0xf]
        %v481 = vld [vmem:[%s253 + $0xcc] sm:$0xf]
        %v482 = vld [vmem:[%s253 + $0xd0] sm:$0xf]
        %v483 = vld [vmem:[%s253 + $0xd4] sm:$0xf]
        %v484 = vld [vmem:[%s253 + $0xd8] sm:$0xf]
        %v485 = vld [vmem:[%s253 + $0xdc] sm:$0xf]
        %v486 = vld [vmem:[%s253 + $0xe0] sm:$0xf]
        %v487 = vld [vmem:[%s253 + $0xe4] sm:$0xf]
        %v488 = vld [vmem:[%s253 + $0xe8] sm:$0xf]
        %v489 = vld [vmem:[%s253 + $0xec] sm:$0xf]
        %v490 = vld [vmem:[%s253 + $0xf0] sm:$0xf]
        %v491 = vld [vmem:[%s253 + $0xf4] sm:$0xf]
        %v492 = vld [vmem:[%s253 + $0xf8] sm:$0xf]
        %v493 = vld [vmem:[%s253 + $0xfc] sm:$0xf]
        %v494 = vld [vmem:[#allocation6] sm:$0xf]
        %v495 = vld [vmem:[#allocation6 + $0x4] sm:$0xf]
        %v496 = vld [vmem:[#allocation6 + $0x8] sm:$0xf]
        %v497 = vld [vmem:[#allocation6 + $0xc] sm:$0xf]
        %v498 = vld [vmem:[#allocation6 + $0x10] sm:$0xf]
        %v499 = vld [vmem:[#allocation6 + $0x14] sm:$0xf]
        %v500 = vld [vmem:[#allocation6 + $0x18] sm:$0xf]
        %v501 = vld [vmem:[#allocation6 + $0x1c] sm:$0xf]
        %v502 = vld [vmem:[#allocation6 + $0x20] sm:$0xf]
        %v503 = vld [vmem:[#allocation6 + $0x24] sm:$0xf]
        %v504 = vld [vmem:[#allocation6 + $0x28] sm:$0xf]
        %v505 = vld [vmem:[#allocation6 + $0x2c] sm:$0xf]
        %v506 = vld [vmem:[#allocation6 + $0x30] sm:$0xf]
        %v507 = vld [vmem:[#allocation6 + $0x34] sm:$0xf]
        %v508 = vld [vmem:[#allocation6 + $0x38] sm:$0xf]
        %v509 = vld [vmem:[#allocation6 + $0x3c] sm:$0xf]
        %v574 = vunpack.c.l.b16 %v430
        %v575 = vunpack.c.l.b16 %v431
        %v576 = vunpack.c.l.b16 %v432
        %v577 = vunpack.c.l.b16 %v433
        %v578 = vunpack.c.l.b16 %v434
        %v579 = vunpack.c.l.b16 %v435
        %v580 = vunpack.c.l.b16 %v436
        %v581 = vunpack.c.l.b16 %v437
        %v582 = vunpack.c.l.b16 %v438
        %v583 = vunpack.c.l.b16 %v439
        %v584 = vunpack.c.l.b16 %v440
        %v585 = vunpack.c.l.b16 %v441
        %v586 = vunpack.c.l.b16 %v442
        %v587 = vunpack.c.l.b16 %v443
        %v588 = vunpack.c.l.b16 %v444
        %v589 = vunpack.c.l.b16 %v445
        %v590 = vunpack.c.l.b16 %v446
        %v591 = vunpack.c.l.b16 %v447
        %v592 = vunpack.c.l.b16 %v448
        %v593 = vunpack.c.l.b16 %v449
        %v594 = vunpack.c.l.b16 %v450
        %v595 = vunpack.c.l.b16 %v451
        %v596 = vunpack.c.l.b16 %v452
        %v597 = vunpack.c.l.b16 %v453
        %v598 = vunpack.c.l.b16 %v454
        %v599 = vunpack.c.l.b16 %v455
        %v600 = vunpack.c.l.b16 %v456
        %v601 = vunpack.c.l.b16 %v457
        %v602 = vunpack.c.l.b16 %v458
        %v603 = vunpack.c.l.b16 %v459
        %v604 = vunpack.c.l.b16 %v460
        %v605 = vunpack.c.l.b16 %v461
        %v606 = vunpack.c.l.b16 %v462
        %v607 = vunpack.c.l.b16 %v463
        %v608 = vunpack.c.l.b16 %v464
        %v609 = vunpack.c.l.b16 %v465
        %v610 = vunpack.c.l.b16 %v466
        %v611 = vunpack.c.l.b16 %v467
        %v612 = vunpack.c.l.b16 %v468
        %v613 = vunpack.c.l.b16 %v469
        %v614 = vunpack.c.l.b16 %v470
        %v615 = vunpack.c.l.b16 %v471
        %v616 = vunpack.c.l.b16 %v472
        %v617 = vunpack.c.l.b16 %v473
        %v618 = vunpack.c.l.b16 %v474
        %v619 = vunpack.c.l.b16 %v475
        %v620 = vunpack.c.l.b16 %v476
        %v621 = vunpack.c.l.b16 %v477
        %v622 = vunpack.c.l.b16 %v478
        %v623 = vunpack.c.l.b16 %v479
        %v624 = vunpack.c.l.b16 %v480
        %v625 = vunpack.c.l.b16 %v481
        %v626 = vunpack.c.l.b16 %v482
        %v627 = vunpack.c.l.b16 %v483
        %v628 = vunpack.c.l.b16 %v484
        %v629 = vunpack.c.l.b16 %v485
        %v630 = vunpack.c.l.b16 %v486
        %v631 = vunpack.c.l.b16 %v487
        %v632 = vunpack.c.l.b16 %v488
        %v633 = vunpack.c.l.b16 %v489
        %v634 = vunpack.c.l.b16 %v490
        %v635 = vunpack.c.l.b16 %v491
        %v636 = vunpack.c.l.b16 %v492
        %v637 = vunpack.c.l.b16 %v493
        %v638 = vpack.c.b16 %v575, %v574
        %v639 = vpack.c.b16 %v577, %v576
        %v640 = vpack.c.b16 %v579, %v578
        %v641 = vpack.c.b16 %v581, %v580
        %v642 = vpack.c.b16 %v583, %v582
        %v643 = vpack.c.b16 %v585, %v584
        %v644 = vpack.c.b16 %v587, %v586
        %v645 = vpack.c.b16 %v589, %v588
        %v646 = vpack.c.b16 %v591, %v590
        %v647 = vpack.c.b16 %v593, %v592
        %v648 = vpack.c.b16 %v595, %v594
        %v649 = vpack.c.b16 %v597, %v596
        %v650 = vpack.c.b16 %v599, %v598
        %v651 = vpack.c.b16 %v601, %v600
        %v652 = vpack.c.b16 %v603, %v602
        %v653 = vpack.c.b16 %v605, %v604
        %v654 = vpack.c.b16 %v607, %v606
        %v655 = vpack.c.b16 %v609, %v608
        %v656 = vpack.c.b16 %v611, %v610
        %v657 = vpack.c.b16 %v613, %v612
        %v658 = vpack.c.b16 %v615, %v614
        %v659 = vpack.c.b16 %v617, %v616
        %v660 = vpack.c.b16 %v619, %v618
        %v661 = vpack.c.b16 %v621, %v620
        %v662 = vpack.c.b16 %v623, %v622
        %v663 = vpack.c.b16 %v625, %v624
        %v664 = vpack.c.b16 %v627, %v626
        %v665 = vpack.c.b16 %v629, %v628
        %v666 = vpack.c.b16 %v631, %v630
        %v667 = vpack.c.b16 %v633, %v632
        %v668 = vpack.c.b16 %v635, %v634
        %v669 = vpack.c.b16 %v637, %v636
        %v718 = vunpack.c.l.b16 %v494
        %v719 = vunpack.c.l.b16 %v495
        %v720 = vunpack.c.l.b16 %v496
        %v721 = vunpack.c.l.b16 %v497
        %v722 = vunpack.c.l.b16 %v498
        %v723 = vunpack.c.l.b16 %v499
        %v724 = vunpack.c.l.b16 %v500
        %v725 = vunpack.c.l.b16 %v501
        %v726 = vunpack.c.l.b16 %v502
        %v727 = vunpack.c.l.b16 %v503
        %v728 = vunpack.c.l.b16 %v504
        %v729 = vunpack.c.l.b16 %v505
        %v730 = vunpack.c.l.b16 %v506
        %v731 = vunpack.c.l.b16 %v507
        %v732 = vunpack.c.l.b16 %v508
        %v733 = vunpack.c.l.b16 %v509
        %v734 = vpack.c.b16 %v719, %v718
        %v735 = vpack.c.b16 %v721, %v720
        %v736 = vpack.c.b16 %v723, %v722
        %v737 = vpack.c.b16 %v725, %v724
        %v738 = vpack.c.b16 %v727, %v726
        %v739 = vpack.c.b16 %v729, %v728
        %v740 = vpack.c.b16 %v731, %v730
        %v741 = vpack.c.b16 %v733, %v732
        %750 = vmatprep.subr.bf16.mxu0 0
        %751 = vmatpush1.bf16.msra.mxu0 %v734
        %752 = vmatprep.subr.bf16.mxu0 0
        %753 = vmatpush1.bf16.msra.mxu0 %v735
        %754 = vmatprep.subr.bf16.mxu0 0
        %755 = vmatpush1.bf16.msra.mxu0 %v736
        %756 = vmatprep.subr.bf16.mxu0 0
        %757 = vmatpush1.bf16.msra.mxu0 %v737
        %758 = vmatprep.subr.bf16.mxu0 0
        %759 = vmatpush1.bf16.msra.mxu0 %v738
        %760 = vmatprep.subr.bf16.mxu0 0
        %761 = vmatpush1.bf16.msra.mxu0 %v739
        %762 = vmatprep.subr.bf16.mxu0 0
        %763 = vmatpush1.bf16.msra.mxu0 %v740
        %764 = vmatprep.subr.bf16.mxu0 0
        %765 = vmatpush1.bf16.msra.mxu0 %v741
        %766 = vmatprep.subr.bf16.mxu0 0
        %767 = vmatpush1.bf16.msra.mxu0 0
        %768 = vmatprep.subr.bf16.mxu0 0
        %769 = vmatpush1.bf16.msra.mxu0 0
        %770 = vmatprep.subr.bf16.mxu0 0
        %771 = vmatpush1.bf16.msra.mxu0 0
        %772 = vmatprep.subr.bf16.mxu0 0
        %773 = vmatpush1.bf16.msra.mxu0 0
        %774 = vmatprep.subr.bf16.mxu0 0
        %775 = vmatpush1.bf16.msra.mxu0 0
        %776 = vmatprep.subr.bf16.mxu0 0
        %777 = vmatpush1.bf16.msra.mxu0 0
        %778 = vmatprep.subr.bf16.mxu0 0
        %779 = vmatpush1.bf16.msra.mxu0 0
        %780 = vmatprep.subr.bf16.mxu0 0
        %781 = vmatpush1.bf16.msra.mxu0 0
        %782 = vmatprep.mubr.bf16.mxu0 0
        %783 = vmatmul.mubr.bf16.gmra.mrb[0].mxu0 %v638
        %v784 = vpop.f32.mrb[0].mxu0
        %v785 = vadd.f32 0.0, %v784
        %v786 = vpop.f32.mrb[0].mxu0
        %v787 = vpop.f32.mrb[0].mxu0
        %v788 = vadd.f32 0.0, %v787
        %v789 = vpop.f32.mrb[0].mxu0
        %790 = vmatprep.mubr.bf16.mxu0 0
        %791 = vmatmul.mubr.bf16.gmra.mrb[0].mxu0 %v639
        %v792 = vpop.f32.mrb[0].mxu0
        %v793 = vadd.f32 0.0, %v792
        %v794 = vpop.f32.mrb[0].mxu0
        %v795 = vpop.f32.mrb[0].mxu0
        %v796 = vadd.f32 0.0, %v795
        %v797 = vpop.f32.mrb[0].mxu0
        %798 = vmatprep.mubr.bf16.mxu0 0
        %799 = vmatmul.mubr.bf16.gmra.mrb[0].mxu0 %v640
        %v800 = vpop.f32.mrb[0].mxu0
        %v801 = vadd.f32 0.0, %v800
        %v802 = vpop.f32.mrb[0].mxu0
        %v803 = vpop.f32.mrb[0].mxu0
        %v804 = vadd.f32 0.0, %v803
        %v805 = vpop.f32.mrb[0].mxu0
        %806 = vmatprep.mubr.bf16.mxu0 0
        %807 = vmatmul.mubr.bf16.gmra.mrb[0].mxu0 %v641
        %v808 = vpop.f32.mrb[0].mxu0
        %v809 = vadd.f32 0.0, %v808
        %v810 = vpop.f32.mrb[0].mxu0
        %v811 = vpop.f32.mrb[0].mxu0
        %v812 = vadd.f32 0.0, %v811
        %v813 = vpop.f32.mrb[0].mxu0
        %814 = vmatprep.mubr.bf16.mxu0 0
        %815 = vmatmul.mubr.bf16.gmra.mrb[0].mxu0 %v642
        %v816 = vpop.f32.mrb[0].mxu0
        %v817 = vadd.f32 0.0, %v816
        %v818 = vpop.f32.mrb[0].mxu0
        %v819 = vpop.f32.mrb[0].mxu0
        %v820 = vadd.f32 0.0, %v819
        %v821 = vpop.f32.mrb[0].mxu0
        %822 = vmatprep.mubr.bf16.mxu0 0
        %823 = vmatmul.mubr.bf16.gmra.mrb[0].mxu0 %v643
        %v824 = vpop.f32.mrb[0].mxu0
        %v825 = vadd.f32 0.0, %v824
        %v826 = vpop.f32.mrb[0].mxu0
        %v827 = vpop.f32.mrb[0].mxu0
        %v828 = vadd.f32 0.0, %v827
        %v829 = vpop.f32.mrb[0].mxu0
        %830 = vmatprep.mubr.bf16.mxu0 0
        %831 = vmatmul.mubr.bf16.gmra.mrb[0].mxu0 %v644
        %v832 = vpop.f32.mrb[0].mxu0
        %v833 = vadd.f32 0.0, %v832
        %v834 = vpop.f32.mrb[0].mxu0
        %v835 = vpop.f32.mrb[0].mxu0
        %v836 = vadd.f32 0.0, %v835
        %v837 = vpop.f32.mrb[0].mxu0
        %838 = vmatprep.mubr.bf16.mxu0 0
        %839 = vmatmul.mubr.bf16.gmra.mrb[0].mxu0 %v645
        %v840 = vpop.f32.mrb[0].mxu0
        %v841 = vadd.f32 0.0, %v840
        %v842 = vpop.f32.mrb[0].mxu0
        %v843 = vpop.f32.mrb[0].mxu0
        %v844 = vadd.f32 0.0, %v843
        %v845 = vpop.f32.mrb[0].mxu0
        %846 = vmatprep.mubr.bf16.mxu0 0
        %847 = vmatmul.mubr.bf16.gmra.mrb[0].mxu0 %v646
        %v848 = vpop.f32.mrb[0].mxu0
        %v849 = vadd.f32 0.0, %v848
        %v850 = vpop.f32.mrb[0].mxu0
        %v851 = vpop.f32.mrb[0].mxu0
        %v852 = vadd.f32 0.0, %v851
        %v853 = vpop.f32.mrb[0].mxu0
        %854 = vmatprep.mubr.bf16.mxu0 0
        %855 = vmatmul.mubr.bf16.gmra.mrb[0].mxu0 %v647
        %v856 = vpop.f32.mrb[0].mxu0
        %v857 = vadd.f32 0.0, %v856
        %v858 = vpop.f32.mrb[0].mxu0
        %v859 = vpop.f32.mrb[0].mxu0
        %v860 = vadd.f32 0.0, %v859
        %v861 = vpop.f32.mrb[0].mxu0
        %862 = vmatprep.mubr.bf16.mxu0 0
        %863 = vmatmul.mubr.bf16.gmra.mrb[0].mxu0 %v648
        %v864 = vpop.f32.mrb[0].mxu0
        %v865 = vadd.f32 0.0, %v864
        %v866 = vpop.f32.mrb[0].mxu0
        %v867 = vpop.f32.mrb[0].mxu0
        %v868 = vadd.f32 0.0, %v867
        %v869 = vpop.f32.mrb[0].mxu0
        %870 = vmatprep.mubr.bf16.mxu0 0
        %871 = vmatmul.mubr.bf16.gmra.mrb[0].mxu0 %v649
        %v872 = vpop.f32.mrb[0].mxu0
        %v873 = vadd.f32 0.0, %v872
        %v874 = vpop.f32.mrb[0].mxu0
        %v875 = vpop.f32.mrb[0].mxu0
        %v876 = vadd.f32 0.0, %v875
        %v877 = vpop.f32.mrb[0].mxu0
        %878 = vmatprep.mubr.bf16.mxu0 0
        %879 = vmatmul.mubr.bf16.gmra.mrb[0].mxu0 %v650
        %v880 = vpop.f32.mrb[0].mxu0
        %v881 = vadd.f32 0.0, %v880
        %v882 = vpop.f32.mrb[0].mxu0
        %v883 = vpop.f32.mrb[0].mxu0
        %v884 = vadd.f32 0.0, %v883
        %v885 = vpop.f32.mrb[0].mxu0
        %886 = vmatprep.mubr.bf16.mxu0 0
        %887 = vmatmul.mubr.bf16.gmra.mrb[0].mxu0 %v651
        %v888 = vpop.f32.mrb[0].mxu0
        %v889 = vadd.f32 0.0, %v888
        %v890 = vpop.f32.mrb[0].mxu0
        %v891 = vpop.f32.mrb[0].mxu0
        %v892 = vadd.f32 0.0, %v891
        %v893 = vpop.f32.mrb[0].mxu0
        %894 = vmatprep.mubr.bf16.mxu0 0
        %895 = vmatmul.mubr.bf16.gmra.mrb[0].mxu0 %v652
        %v896 = vpop.f32.mrb[0].mxu0
        %v897 = vadd.f32 0.0, %v896
        %v898 = vpop.f32.mrb[0].mxu0
        %v899 = vpop.f32.mrb[0].mxu0
        %v900 = vadd.f32 0.0, %v899
        %v901 = vpop.f32.mrb[0].mxu0
        %902 = vmatprep.mubr.bf16.mxu0 0
        %903 = vmatmul.mubr.bf16.gmra.mrb[0].mxu0 %v653
        %v904 = vpop.f32.mrb[0].mxu0
        %v905 = vadd.f32 0.0, %v904
        %v906 = vpop.f32.mrb[0].mxu0
        %v907 = vpop.f32.mrb[0].mxu0
        %v908 = vadd.f32 0.0, %v907
        %v909 = vpop.f32.mrb[0].mxu0
        %910 = vmatprep.mubr.bf16.mxu0 0
        %911 = vmatmul.mubr.bf16.gmra.mrb[0].mxu0 %v654
        %v912 = vpop.f32.mrb[0].mxu0
        %v913 = vadd.f32 0.0, %v912
        %v914 = vpop.f32.mrb[0].mxu0
        %v915 = vpop.f32.mrb[0].mxu0
        %v916 = vadd.f32 0.0, %v915
        %v917 = vpop.f32.mrb[0].mxu0
        %918 = vmatprep.mubr.bf16.mxu0 0
        %919 = vmatmul.mubr.bf16.gmra.mrb[0].mxu0 %v655
        %v920 = vpop.f32.mrb[0].mxu0
        %v921 = vadd.f32 0.0, %v920
        %v922 = vpop.f32.mrb[0].mxu0
        %v923 = vpop.f32.mrb[0].mxu0
        %v924 = vadd.f32 0.0, %v923
        %v925 = vpop.f32.mrb[0].mxu0
        %926 = vmatprep.mubr.bf16.mxu0 0
        %927 = vmatmul.mubr.bf16.gmra.mrb[0].mxu0 %v656
        %v928 = vpop.f32.mrb[0].mxu0
        %v929 = vadd.f32 0.0, %v928
        %v930 = vpop.f32.mrb[0].mxu0
        %v931 = vpop.f32.mrb[0].mxu0
        %v932 = vadd.f32 0.0, %v931
        %v933 = vpop.f32.mrb[0].mxu0
        %934 = vmatprep.mubr.bf16.mxu0 0
        %935 = vmatmul.mubr.bf16.gmra.mrb[0].mxu0 %v657
        %v936 = vpop.f32.mrb[0].mxu0
        %v937 = vadd.f32 0.0, %v936
        %v938 = vpop.f32.mrb[0].mxu0
        %v939 = vpop.f32.mrb[0].mxu0
        %v940 = vadd.f32 0.0, %v939
        %v941 = vpop.f32.mrb[0].mxu0
        %942 = vmatprep.mubr.bf16.mxu0 0
        %943 = vmatmul.mubr.bf16.gmra.mrb[0].mxu0 %v658
        %v944 = vpop.f32.mrb[0].mxu0
        %v945 = vadd.f32 0.0, %v944
        %v946 = vpop.f32.mrb[0].mxu0
        %v947 = vpop.f32.mrb[0].mxu0
        %v948 = vadd.f32 0.0, %v947
        %v949 = vpop.f32.mrb[0].mxu0
        %950 = vmatprep.mubr.bf16.mxu0 0
        %951 = vmatmul.mubr.bf16.gmra.mrb[0].mxu0 %v659
        %v952 = vpop.f32.mrb[0].mxu0
        %v953 = vadd.f32 0.0, %v952
        %v954 = vpop.f32.mrb[0].mxu0
        %v955 = vpop.f32.mrb[0].mxu0
        %v956 = vadd.f32 0.0, %v955
        %v957 = vpop.f32.mrb[0].mxu0
        %958 = vmatprep.mubr.bf16.mxu0 0
        %959 = vmatmul.mubr.bf16.gmra.mrb[0].mxu0 %v660
        %v960 = vpop.f32.mrb[0].mxu0
        %v961 = vadd.f32 0.0, %v960
        %v962 = vpop.f32.mrb[0].mxu0
        %v963 = vpop.f32.mrb[0].mxu0
        %v964 = vadd.f32 0.0, %v963
        %v965 = vpop.f32.mrb[0].mxu0
        %966 = vmatprep.mubr.bf16.mxu0 0
        %967 = vmatmul.mubr.bf16.gmra.mrb[0].mxu0 %v661
        %v968 = vpop.f32.mrb[0].mxu0
        %v969 = vadd.f32 0.0, %v968
        %v970 = vpop.f32.mrb[0].mxu0
        %v971 = vpop.f32.mrb[0].mxu0
        %v972 = vadd.f32 0.0, %v971
        %v973 = vpop.f32.mrb[0].mxu0
        %974 = vmatprep.mubr.bf16.mxu0 0
        %975 = vmatmul.mubr.bf16.gmra.mrb[0].mxu0 %v662
        %v976 = vpop.f32.mrb[0].mxu0
        %v977 = vadd.f32 0.0, %v976
        %v978 = vpop.f32.mrb[0].mxu0
        %v979 = vpop.f32.mrb[0].mxu0
        %v980 = vadd.f32 0.0, %v979
        %v981 = vpop.f32.mrb[0].mxu0
        %982 = vmatprep.mubr.bf16.mxu0 0
        %983 = vmatmul.mubr.bf16.gmra.mrb[0].mxu0 %v663
        %v984 = vpop.f32.mrb[0].mxu0
        %v985 = vadd.f32 0.0, %v984
        %v986 = vpop.f32.mrb[0].mxu0
        %v987 = vpop.f32.mrb[0].mxu0
        %v988 = vadd.f32 0.0, %v987
        %v989 = vpop.f32.mrb[0].mxu0
        %990 = vmatprep.mubr.bf16.mxu0 0
        %991 = vmatmul.mubr.bf16.gmra.mrb[0].mxu0 %v664
        %v992 = vpop.f32.mrb[0].mxu0
        %v993 = vadd.f32 0.0, %v992
        %v994 = vpop.f32.mrb[0].mxu0
        %v995 = vpop.f32.mrb[0].mxu0
        %v996 = vadd.f32 0.0, %v995
        %v997 = vpop.f32.mrb[0].mxu0
        %998 = vmatprep.mubr.bf16.mxu0 0
        %999 = vmatmul.mubr.bf16.gmra.mrb[0].mxu0 %v665
        %v1000 = vpop.f32.mrb[0].mxu0
        %v1001 = vadd.f32 0.0, %v1000
        %v1002 = vpop.f32.mrb[0].mxu0
        %v1003 = vpop.f32.mrb[0].mxu0
        %v1004 = vadd.f32 0.0, %v1003
        %v1005 = vpop.f32.mrb[0].mxu0
        %1006 = vmatprep.mubr.bf16.mxu0 0
        %1007 = vmatmul.mubr.bf16.gmra.mrb[0].mxu0 %v666
        %v1008 = vpop.f32.mrb[0].mxu0
        %v1009 = vadd.f32 0.0, %v1008
        %v1010 = vpop.f32.mrb[0].mxu0
        %v1011 = vpop.f32.mrb[0].mxu0
        %v1012 = vadd.f32 0.0, %v1011
        %v1013 = vpop.f32.mrb[0].mxu0
        %1014 = vmatprep.mubr.bf16.mxu0 0
        %1015 = vmatmul.mubr.bf16.gmra.mrb[0].mxu0 %v667
        %v1016 = vpop.f32.mrb[0].mxu0
        %v1017 = vadd.f32 0.0, %v1016
        %v1018 = vpop.f32.mrb[0].mxu0
        %v1019 = vpop.f32.mrb[0].mxu0
        %v1020 = vadd.f32 0.0, %v1019
        %v1021 = vpop.f32.mrb[0].mxu0
        %1022 = vmatprep.mubr.bf16.mxu0 0
        %1023 = vmatmul.mubr.bf16.gmra.mrb[0].mxu0 %v668
        %v1024 = vpop.f32.mrb[0].mxu0
        %v1025 = vadd.f32 0.0, %v1024
        %v1026 = vpop.f32.mrb[0].mxu0
        %v1027 = vpop.f32.mrb[0].mxu0
        %v1028 = vadd.f32 0.0, %v1027
        %v1029 = vpop.f32.mrb[0].mxu0
        %1030 = vmatprep.mubr.bf16.mxu0 0
        %1031 = vmatmul.mubr.bf16.gmra.mrb[0].mxu0 %v669
        %v1032 = vpop.f32.mrb[0].mxu0
        %v1033 = vadd.f32 0.0, %v1032
        %v1034 = vpop.f32.mrb[0].mxu0
        %v1035 = vpop.f32.mrb[0].mxu0
        %v1036 = vadd.f32 0.0, %v1035
        %v1037 = vpop.f32.mrb[0].mxu0
        %1038 = vdwg.mxu0
        %v1039 = vadd.f32 %v366, %v785
        %v1040 = vadd.f32 %v367, %v788
        %v1041 = vadd.f32 %v368, %v793
        %v1042 = vadd.f32 %v369, %v796
        %v1043 = vadd.f32 %v370, %v801
        %v1044 = vadd.f32 %v371, %v804
        %v1045 = vadd.f32 %v372, %v809
        %v1046 = vadd.f32 %v373, %v812
        %v1047 = vadd.f32 %v374, %v817
        %v1048 = vadd.f32 %v375, %v820
        %v1049 = vadd.f32 %v376, %v825
        %v1050 = vadd.f32 %v377, %v828
        %v1051 = vadd.f32 %v378, %v833
        %v1052 = vadd.f32 %v379, %v836
        %v1053 = vadd.f32 %v380, %v841
        %v1054 = vadd.f32 %v381, %v844
        %v1055 = vadd.f32 %v382, %v849
        %v1056 = vadd.f32 %v383, %v852
        %v1057 = vadd.f32 %v384, %v857
        %v1058 = vadd.f32 %v385, %v860
        %v1059 = vadd.f32 %v386, %v865
        %v1060 = vadd.f32 %v387, %v868
        %v1061 = vadd.f32 %v388, %v873
        %v1062 = vadd.f32 %v389, %v876
        %v1063 = vadd.f32 %v390, %v881
        %v1064 = vadd.f32 %v391, %v884
        %v1065 = vadd.f32 %v392, %v889
        %v1066 = vadd.f32 %v393, %v892
        %v1067 = vadd.f32 %v394, %v897
        %v1068 = vadd.f32 %v395, %v900
        %v1069 = vadd.f32 %v396, %v905
        %v1070 = vadd.f32 %v397, %v908
        %v1071 = vadd.f32 %v398, %v913
        %v1072 = vadd.f32 %v399, %v916
        %v1073 = vadd.f32 %v400, %v921
        %v1074 = vadd.f32 %v401, %v924
        %v1075 = vadd.f32 %v402, %v929
        %v1076 = vadd.f32 %v403, %v932
        %v1077 = vadd.f32 %v404, %v937
        %v1078 = vadd.f32 %v405, %v940
        %v1079 = vadd.f32 %v406, %v945
        %v1080 = vadd.f32 %v407, %v948
        %v1081 = vadd.f32 %v408, %v953
        %v1082 = vadd.f32 %v409, %v956
        %v1083 = vadd.f32 %v410, %v961
        %v1084 = vadd.f32 %v411, %v964
        %v1085 = vadd.f32 %v412, %v969
        %v1086 = vadd.f32 %v413, %v972
        %v1087 = vadd.f32 %v414, %v977
        %v1088 = vadd.f32 %v415, %v980
        %v1089 = vadd.f32 %v416, %v985
        %v1090 = vadd.f32 %v417, %v988
        %v1091 = vadd.f32 %v418, %v993
        %v1092 = vadd.f32 %v419, %v996
        %v1093 = vadd.f32 %v420, %v1001
        %v1094 = vadd.f32 %v421, %v1004
        %v1095 = vadd.f32 %v422, %v1009
        %v1096 = vadd.f32 %v423, %v1012
        %v1097 = vadd.f32 %v424, %v1017
        %v1098 = vadd.f32 %v425, %v1020
        %v1099 = vadd.f32 %v426, %v1025
        %v1100 = vadd.f32 %v427, %v1028
        %v1101 = vadd.f32 %v428, %v1033
        %v1102 = vadd.f32 %v429, %v1036
        %1103 = vst [vmem:[#allocation2] sm:$0xff] %v1039
        %1104 = vst [vmem:[#allocation2 + $0x8] sm:$0xff] %v1040
        %1105 = vst [vmem:[#allocation2 + $0x10] sm:$0xff] %v1041
        %1106 = vst [vmem:[#allocation2 + $0x18] sm:$0xff] %v1042
        %1107 = vst [vmem:[#allocation2 + $0x20] sm:$0xff] %v1043
        %1108 = vst [vmem:[#allocation2 + $0x28] sm:$0xff] %v1044
        %1109 = vst [vmem:[#allocation2 + $0x30] sm:$0xff] %v1045
        %1110 = vst [vmem:[#allocation2 + $0x38] sm:$0xff] %v1046
        %1111 = vst [vmem:[#allocation2 + $0x40] sm:$0xff] %v1047
        %1112 = vst [vmem:[#allocation2 + $0x48] sm:$0xff] %v1048
        %1113 = vst [vmem:[#allocation2 + $0x50] sm:$0xff] %v1049
        %1114 = vst [vmem:[#allocation2 + $0x58] sm:$0xff] %v1050
        %1115 = vst [vmem:[#allocation2 + $0x60] sm:$0xff] %v1051
        %1116 = vst [vmem:[#allocation2 + $0x68] sm:$0xff] %v1052
        %1117 = vst [vmem:[#allocation2 + $0x70] sm:$0xff] %v1053
        %1118 = vst [vmem:[#allocation2 + $0x78] sm:$0xff] %v1054
        %1119 = vst [vmem:[#allocation2 + $0x80] sm:$0xff] %v1055
        %1120 = vst [vmem:[#allocation2 + $0x88] sm:$0xff] %v1056
        %1121 = vst [vmem:[#allocation2 + $0x90] sm:$0xff] %v1057
        %1122 = vst [vmem:[#allocation2 + $0x98] sm:$0xff] %v1058
        %1123 = vst [vmem:[#allocation2 + $0xa0] sm:$0xff] %v1059
        %1124 = vst [vmem:[#allocation2 + $0xa8] sm:$0xff] %v1060
        %1125 = vst [vmem:[#allocation2 + $0xb0] sm:$0xff] %v1061
        %1126 = vst [vmem:[#allocation2 + $0xb8] sm:$0xff] %v1062
        %1127 = vst [vmem:[#allocation2 + $0xc0] sm:$0xff] %v1063
        %1128 = vst [vmem:[#allocation2 + $0xc8] sm:$0xff] %v1064
        %1129 = vst [vmem:[#allocation2 + $0xd0] sm:$0xff] %v1065
        %1130 = vst [vmem:[#allocation2 + $0xd8] sm:$0xff] %v1066
        %1131 = vst [vmem:[#allocation2 + $0xe0] sm:$0xff] %v1067
        %1132 = vst [vmem:[#allocation2 + $0xe8] sm:$0xff] %v1068
        %1133 = vst [vmem:[#allocation2 + $0xf0] sm:$0xff] %v1069
        %1134 = vst [vmem:[#allocation2 + $0xf8] sm:$0xff] %v1070
        %1135 = vst [vmem:[#allocation2 + $0x100] sm:$0xff] %v1071
        %1136 = vst [vmem:[#allocation2 + $0x108] sm:$0xff] %v1072
        %1137 = vst [vmem:[#allocation2 + $0x110] sm:$0xff] %v1073
        %1138 = vst [vmem:[#allocation2 + $0x118] sm:$0xff] %v1074
        %1139 = vst [vmem:[#allocation2 + $0x120] sm:$0xff] %v1075
        %1140 = vst [vmem:[#allocation2 + $0x128] sm:$0xff] %v1076
        %1141 = vst [vmem:[#allocation2 + $0x130] sm:$0xff] %v1077
        %1142 = vst [vmem:[#allocation2 + $0x138] sm:$0xff] %v1078
        %1143 = vst [vmem:[#allocation2 + $0x140] sm:$0xff] %v1079
        %1144 = vst [vmem:[#allocation2 + $0x148] sm:$0xff] %v1080
        %1145 = vst [vmem:[#allocation2 + $0x150] sm:$0xff] %v1081
        %1146 = vst [vmem:[#allocation2 + $0x158] sm:$0xff] %v1082
        %1147 = vst [vmem:[#allocation2 + $0x160] sm:$0xff] %v1083
        %1148 = vst [vmem:[#allocation2 + $0x168] sm:$0xff] %v1084
        %1149 = vst [vmem:[#allocation2 + $0x170] sm:$0xff] %v1085
        %1150 = vst [vmem:[#allocation2 + $0x178] sm:$0xff] %v1086
        %1151 = vst [vmem:[#allocation2 + $0x180] sm:$0xff] %v1087
        %1152 = vst [vmem:[#allocation2 + $0x188] sm:$0xff] %v1088
        %1153 = vst [vmem:[#allocation2 + $0x190] sm:$0xff] %v1089
        %1154 = vst [vmem:[#allocation2 + $0x198] sm:$0xff] %v1090
        %1155 = vst [vmem:[#allocation2 + $0x1a0] sm:$0xff] %v1091
        %1156 = vst [vmem:[#allocation2 + $0x1a8] sm:$0xff] %v1092
        %1157 = vst [vmem:[#allocation2 + $0x1b0] sm:$0xff] %v1093
        %1158 = vst [vmem:[#allocation2 + $0x1b8] sm:$0xff] %v1094
        %1159 = vst [vmem:[#allocation2 + $0x1c0] sm:$0xff] %v1095
        %1160 = vst [vmem:[#allocation2 + $0x1c8] sm:$0xff] %v1096
        %1161 = vst [vmem:[#allocation2 + $0x1d0] sm:$0xff] %v1097
        %1162 = vst [vmem:[#allocation2 + $0x1d8] sm:$0xff] %v1098
        %1163 = vst [vmem:[#allocation2 + $0x1e0] sm:$0xff] %v1099
        %1164 = vst [vmem:[#allocation2 + $0x1e8] sm:$0xff] %v1100
        %1165 = vst [vmem:[#allocation2 + $0x1f0] sm:$0xff] %v1101
        %1166 = vst [vmem:[#allocation2 + $0x1f8] sm:$0xff] %v1102
        // Predicated region
        $region49: #{tpu_custom_call.1} parent=35 // pred_check
          %p1167 = pneg %p298
        $region50: #{tpu_custom_call.1} parent=35 // pred_check_branch
          %1169 = sbr.rel (%p1167) target = $region52
        $region51: #{tpu_custom_call.1} parent=35 // pred_region
          %v1170 = vld [vmem:[#allocation2] sm:$0xff]
          %v1171 = vld [vmem:[#allocation2 + $0x8] sm:$0xff]
          %v1172 = vld [vmem:[#allocation2 + $0x10] sm:$0xff]
          %v1173 = vld [vmem:[#allocation2 + $0x18] sm:$0xff]
          %v1174 = vld [vmem:[#allocation2 + $0x20] sm:$0xff]
          %v1175 = vld [vmem:[#allocation2 + $0x28] sm:$0xff]
          %v1176 = vld [vmem:[#allocation2 + $0x30] sm:$0xff]
          %v1177 = vld [vmem:[#allocation2 + $0x38] sm:$0xff]
          %v1178 = vld [vmem:[#allocation2 + $0x40] sm:$0xff]
          %v1179 = vld [vmem:[#allocation2 + $0x48] sm:$0xff]
          %v1180 = vld [vmem:[#allocation2 + $0x50] sm:$0xff]
          %v1181 = vld [vmem:[#allocation2 + $0x58] sm:$0xff]
          %v1182 = vld [vmem:[#allocation2 + $0x60] sm:$0xff]
          %v1183 = vld [vmem:[#allocation2 + $0x68] sm:$0xff]
          %v1184 = vld [vmem:[#allocation2 + $0x70] sm:$0xff]
          %v1185 = vld [vmem:[#allocation2 + $0x78] sm:$0xff]
          %v1186 = vld [vmem:[#allocation2 + $0x80] sm:$0xff]
          %v1187 = vld [vmem:[#allocation2 + $0x88] sm:$0xff]
          %v1188 = vld [vmem:[#allocation2 + $0x90] sm:$0xff]
          %v1189 = vld [vmem:[#allocation2 + $0x98] sm:$0xff]
          %v1190 = vld [vmem:[#allocation2 + $0xa0] sm:$0xff]
          %v1191 = vld [vmem:[#allocation2 + $0xa8] sm:$0xff]
          %v1192 = vld [vmem:[#allocation2 + $0xb0] sm:$0xff]
          %v1193 = vld [vmem:[#allocation2 + $0xb8] sm:$0xff]
          %v1194 = vld [vmem:[#allocation2 + $0xc0] sm:$0xff]
          %v1195 = vld [vmem:[#allocation2 + $0xc8] sm:$0xff]
          %v1196 = vld [vmem:[#allocation2 + $0xd0] sm:$0xff]
          %v1197 = vld [vmem:[#allocation2 + $0xd8] sm:$0xff]
          %v1198 = vld [vmem:[#allocation2 + $0xe0] sm:$0xff]
          %v1199 = vld [vmem:[#allocation2 + $0xe8] sm:$0xff]
          %v1200 = vld [vmem:[#allocation2 + $0xf0] sm:$0xff]
          %v1201 = vld [vmem:[#allocation2 + $0xf8] sm:$0xff]
          %v1202 = vld [vmem:[#allocation2 + $0x100] sm:$0xff]
          %v1203 = vld [vmem:[#allocation2 + $0x108] sm:$0xff]
          %v1204 = vld [vmem:[#allocation2 + $0x110] sm:$0xff]
          %v1205 = vld [vmem:[#allocation2 + $0x118] sm:$0xff]
          %v1206 = vld [vmem:[#allocation2 + $0x120] sm:$0xff]
          %v1207 = vld [vmem:[#allocation2 + $0x128] sm:$0xff]
          %v1208 = vld [vmem:[#allocation2 + $0x130] sm:$0xff]
          %v1209 = vld [vmem:[#allocation2 + $0x138] sm:$0xff]
          %v1210 = vld [vmem:[#allocation2 + $0x140] sm:$0xff]
          %v1211 = vld [vmem:[#allocation2 + $0x148] sm:$0xff]
          %v1212 = vld [vmem:[#allocation2 + $0x150] sm:$0xff]
          %v1213 = vld [vmem:[#allocation2 + $0x158] sm:$0xff]
          %v1214 = vld [vmem:[#allocation2 + $0x160] sm:$0xff]
          %v1215 = vld [vmem:[#allocation2 + $0x168] sm:$0xff]
          %v1216 = vld [vmem:[#allocation2 + $0x170] sm:$0xff]
          %v1217 = vld [vmem:[#allocation2 + $0x178] sm:$0xff]
          %v1218 = vld [vmem:[#allocation2 + $0x180] sm:$0xff]
          %v1219 = vld [vmem:[#allocation2 + $0x188] sm:$0xff]
          %v1220 = vld [vmem:[#allocation2 + $0x190] sm:$0xff]
          %v1221 = vld [vmem:[#allocation2 + $0x198] sm:$0xff]
          %v1222 = vld [vmem:[#allocation2 + $0x1a0] sm:$0xff]
          %v1223 = vld [vmem:[#allocation2 + $0x1a8] sm:$0xff]
          %v1224 = vld [vmem:[#allocation2 + $0x1b0] sm:$0xff]
          %v1225 = vld [vmem:[#allocation2 + $0x1b8] sm:$0xff]
          %v1226 = vld [vmem:[#allocation2 + $0x1c0] sm:$0xff]
          %v1227 = vld [vmem:[#allocation2 + $0x1c8] sm:$0xff]
          %v1228 = vld [vmem:[#allocation2 + $0x1d0] sm:$0xff]
          %v1229 = vld [vmem:[#allocation2 + $0x1d8] sm:$0xff]
          %v1230 = vld [vmem:[#allocation2 + $0x1e0] sm:$0xff]
          %v1231 = vld [vmem:[#allocation2 + $0x1e8] sm:$0xff]
          %v1232 = vld [vmem:[#allocation2 + $0x1f0] sm:$0xff]
          %v1233 = vld [vmem:[#allocation2 + $0x1f8] sm:$0xff]
          %v1234 = vld [vmem:[%s292] sm:$0x1]
          %v1236 = vlaneseq
          %v1237 = vshrl.u32 %v1236, 7
          %v1238 = vsub.s32 0, %v1237
          %v1239 = vrot.slane %v1234, %v1238
          %v1241 = vmul.f32 %v1170, %v1239
          %v1242 = vmul.f32 %v1171, %v1239
          %v1243 = vmul.f32 %v1172, %v1239
          %v1244 = vmul.f32 %v1173, %v1239
          %v1245 = vmul.f32 %v1174, %v1239
          %v1246 = vmul.f32 %v1175, %v1239
          %v1247 = vmul.f32 %v1176, %v1239
          %v1248 = vmul.f32 %v1177, %v1239
          %v1249 = vmul.f32 %v1178, %v1239
          %v1250 = vmul.f32 %v1179, %v1239
          %v1251 = vmul.f32 %v1180, %v1239
          %v1252 = vmul.f32 %v1181, %v1239
          %v1253 = vmul.f32 %v1182, %v1239
          %v1254 = vmul.f32 %v1183, %v1239
          %v1255 = vmul.f32 %v1184, %v1239
          %v1256 = vmul.f32 %v1185, %v1239
          %v1257 = vmul.f32 %v1186, %v1239
          %v1258 = vmul.f32 %v1187, %v1239
          %v1259 = vmul.f32 %v1188, %v1239
          %v1260 = vmul.f32 %v1189, %v1239
          %v1261 = vmul.f32 %v1190, %v1239
          %v1262 = vmul.f32 %v1191, %v1239
          %v1263 = vmul.f32 %v1192, %v1239
          %v1264 = vmul.f32 %v1193, %v1239
          %v1265 = vmul.f32 %v1194, %v1239
          %v1266 = vmul.f32 %v1195, %v1239
          %v1267 = vmul.f32 %v1196, %v1239
          %v1268 = vmul.f32 %v1197, %v1239
          %v1269 = vmul.f32 %v1198, %v1239
          %v1270 = vmul.f32 %v1199, %v1239
          %v1271 = vmul.f32 %v1200, %v1239
          %v1272 = vmul.f32 %v1201, %v1239
          %v1273 = vmul.f32 %v1202, %v1239
          %v1274 = vmul.f32 %v1203, %v1239
          %v1275 = vmul.f32 %v1204, %v1239
          %v1276 = vmul.f32 %v1205, %v1239
          %v1277 = vmul.f32 %v1206, %v1239
          %v1278 = vmul.f32 %v1207, %v1239
          %v1279 = vmul.f32 %v1208, %v1239
          %v1280 = vmul.f32 %v1209, %v1239
          %v1281 = vmul.f32 %v1210, %v1239
          %v1282 = vmul.f32 %v1211, %v1239
          %v1283 = vmul.f32 %v1212, %v1239
          %v1284 = vmul.f32 %v1213, %v1239
          %v1285 = vmul.f32 %v1214, %v1239
          %v1286 = vmul.f32 %v1215, %v1239
          %v1287 = vmul.f32 %v1216, %v1239
          %v1288 = vmul.f32 %v1217, %v1239
          %v1289 = vmul.f32 %v1218, %v1239
          %v1290 = vmul.f32 %v1219, %v1239
          %v1291 = vmul.f32 %v1220, %v1239
          %v1292 = vmul.f32 %v1221, %v1239
          %v1293 = vmul.f32 %v1222, %v1239
          %v1294 = vmul.f32 %v1223, %v1239
          %v1295 = vmul.f32 %v1224, %v1239
          %v1296 = vmul.f32 %v1225, %v1239
          %v1297 = vmul.f32 %v1226, %v1239
          %v1298 = vmul.f32 %v1227, %v1239
          %v1299 = vmul.f32 %v1228, %v1239
          %v1300 = vmul.f32 %v1229, %v1239
          %v1301 = vmul.f32 %v1230, %v1239
          %v1302 = vmul.f32 %v1231, %v1239
          %v1303 = vmul.f32 %v1232, %v1239
          %v1304 = vmul.f32 %v1233, %v1239
          %v1305 = vld [vmem:[%s295] sm:$0x1]
          %v1307 = vlaneseq
          %v1308 = vshrl.u32 %v1307, 7
          %v1309 = vsub.s32 0, %v1308
          %v1310 = vrot.slane %v1305, %v1309
          %v1312 = vadd.f32 %v1241, %v1310
          %v1313 = vadd.f32 %v1242, %v1310
          %v1314 = vadd.f32 %v1243, %v1310
          %v1315 = vadd.f32 %v1244, %v1310
          %v1316 = vadd.f32 %v1245, %v1310
          %v1317 = vadd.f32 %v1246, %v1310
          %v1318 = vadd.f32 %v1247, %v1310
          %v1319 = vadd.f32 %v1248, %v1310
          %v1320 = vadd.f32 %v1249, %v1310
          %v1321 = vadd.f32 %v1250, %v1310
          %v1322 = vadd.f32 %v1251, %v1310
          %v1323 = vadd.f32 %v1252, %v1310
          %v1324 = vadd.f32 %v1253, %v1310
          %v1325 = vadd.f32 %v1254, %v1310
          %v1326 = vadd.f32 %v1255, %v1310
          %v1327 = vadd.f32 %v1256, %v1310
          %v1328 = vadd.f32 %v1257, %v1310
          %v1329 = vadd.f32 %v1258, %v1310
          %v1330 = vadd.f32 %v1259, %v1310
          %v1331 = vadd.f32 %v1260, %v1310
          %v1332 = vadd.f32 %v1261, %v1310
          %v1333 = vadd.f32 %v1262, %v1310
          %v1334 = vadd.f32 %v1263, %v1310
          %v1335 = vadd.f32 %v1264, %v1310
          %v1336 = vadd.f32 %v1265, %v1310
          %v1337 = vadd.f32 %v1266, %v1310
          %v1338 = vadd.f32 %v1267, %v1310
          %v1339 = vadd.f32 %v1268, %v1310
          %v1340 = vadd.f32 %v1269, %v1310
          %v1341 = vadd.f32 %v1270, %v1310
          %v1342 = vadd.f32 %v1271, %v1310
          %v1343 = vadd.f32 %v1272, %v1310
          %v1344 = vadd.f32 %v1273, %v1310
          %v1345 = vadd.f32 %v1274, %v1310
          %v1346 = vadd.f32 %v1275, %v1310
          %v1347 = vadd.f32 %v1276, %v1310
          %v1348 = vadd.f32 %v1277, %v1310
          %v1349 = vadd.f32 %v1278, %v1310
          %v1350 = vadd.f32 %v1279, %v1310
          %v1351 = vadd.f32 %v1280, %v1310
          %v1352 = vadd.f32 %v1281, %v1310
          %v1353 = vadd.f32 %v1282, %v1310
          %v1354 = vadd.f32 %v1283, %v1310
          %v1355 = vadd.f32 %v1284, %v1310
          %v1356 = vadd.f32 %v1285, %v1310
          %v1357 = vadd.f32 %v1286, %v1310
          %v1358 = vadd.f32 %v1287, %v1310
          %v1359 = vadd.f32 %v1288, %v1310
          %v1360 = vadd.f32 %v1289, %v1310
          %v1361 = vadd.f32 %v1290, %v1310
          %v1362 = vadd.f32 %v1291, %v1310
          %v1363 = vadd.f32 %v1292, %v1310
          %v1364 = vadd.f32 %v1293, %v1310
          %v1365 = vadd.f32 %v1294, %v1310
          %v1366 = vadd.f32 %v1295, %v1310
          %v1367 = vadd.f32 %v1296, %v1310
          %v1368 = vadd.f32 %v1297, %v1310
          %v1369 = vadd.f32 %v1298, %v1310
          %v1370 = vadd.f32 %v1299, %v1310
          %v1371 = vadd.f32 %v1300, %v1310
          %v1372 = vadd.f32 %v1301, %v1310
          %v1373 = vadd.f32 %v1302, %v1310
          %v1374 = vadd.f32 %v1303, %v1310
          %v1375 = vadd.f32 %v1304, %v1310
          %v1376 = vmax.f32 %v1312, 0.0
          %v1377 = vmax.f32 %v1313, 0.0
          %v1378 = vmax.f32 %v1314, 0.0
          %v1379 = vmax.f32 %v1315, 0.0
          %v1380 = vmax.f32 %v1316, 0.0
          %v1381 = vmax.f32 %v1317, 0.0
          %v1382 = vmax.f32 %v1318, 0.0
          %v1383 = vmax.f32 %v1319, 0.0
          %v1384 = vmax.f32 %v1320, 0.0
          %v1385 = vmax.f32 %v1321, 0.0
          %v1386 = vmax.f32 %v1322, 0.0
          %v1387 = vmax.f32 %v1323, 0.0
          %v1388 = vmax.f32 %v1324, 0.0
          %v1389 = vmax.f32 %v1325, 0.0
          %v1390 = vmax.f32 %v1326, 0.0
          %v1391 = vmax.f32 %v1327, 0.0
          %v1392 = vmax.f32 %v1328, 0.0
          %v1393 = vmax.f32 %v1329, 0.0
          %v1394 = vmax.f32 %v1330, 0.0
          %v1395 = vmax.f32 %v1331, 0.0
          %v1396 = vmax.f32 %v1332, 0.0
          %v1397 = vmax.f32 %v1333, 0.0
          %v1398 = vmax.f32 %v1334, 0.0
          %v1399 = vmax.f32 %v1335, 0.0
          %v1400 = vmax.f32 %v1336, 0.0
          %v1401 = vmax.f32 %v1337, 0.0
          %v1402 = vmax.f32 %v1338, 0.0
          %v1403 = vmax.f32 %v1339, 0.0
          %v1404 = vmax.f32 %v1340, 0.0
          %v1405 = vmax.f32 %v1341, 0.0
          %v1406 = vmax.f32 %v1342, 0.0
          %v1407 = vmax.f32 %v1343, 0.0
          %v1408 = vmax.f32 %v1344, 0.0
          %v1409 = vmax.f32 %v1345, 0.0
          %v1410 = vmax.f32 %v1346, 0.0
          %v1411 = vmax.f32 %v1347, 0.0
          %v1412 = vmax.f32 %v1348, 0.0
          %v1413 = vmax.f32 %v1349, 0.0
          %v1414 = vmax.f32 %v1350, 0.0
          %v1415 = vmax.f32 %v1351, 0.0
          %v1416 = vmax.f32 %v1352, 0.0
          %v1417 = vmax.f32 %v1353, 0.0
          %v1418 = vmax.f32 %v1354, 0.0
          %v1419 = vmax.f32 %v1355, 0.0
          %v1420 = vmax.f32 %v1356, 0.0
          %v1421 = vmax.f32 %v1357, 0.0
          %v1422 = vmax.f32 %v1358, 0.0
          %v1423 = vmax.f32 %v1359, 0.0
          %v1424 = vmax.f32 %v1360, 0.0
          %v1425 = vmax.f32 %v1361, 0.0
          %v1426 = vmax.f32 %v1362, 0.0
          %v1427 = vmax.f32 %v1363, 0.0
          %v1428 = vmax.f32 %v1364, 0.0
          %v1429 = vmax.f32 %v1365, 0.0
          %v1430 = vmax.f32 %v1366, 0.0
          %v1431 = vmax.f32 %v1367, 0.0
          %v1432 = vmax.f32 %v1368, 0.0
          %v1433 = vmax.f32 %v1369, 0.0
          %v1434 = vmax.f32 %v1370, 0.0
          %v1435 = vmax.f32 %v1371, 0.0
          %v1436 = vmax.f32 %v1372, 0.0
          %v1437 = vmax.f32 %v1373, 0.0
          %v1438 = vmax.f32 %v1374, 0.0
          %v1439 = vmax.f32 %v1375, 0.0
          %v1440 = vpack.c.bf16 %v1377, %v1376
          %v1441 = vpack.c.bf16 %v1379, %v1378
          %v1442 = vpack.c.bf16 %v1381, %v1380
          %v1443 = vpack.c.bf16 %v1383, %v1382
          %v1444 = vpack.c.bf16 %v1385, %v1384
          %v1445 = vpack.c.bf16 %v1387, %v1386
          %v1446 = vpack.c.bf16 %v1389, %v1388
          %v1447 = vpack.c.bf16 %v1391, %v1390
          %v1448 = vpack.c.bf16 %v1393, %v1392
          %v1449 = vpack.c.bf16 %v1395, %v1394
          %v1450 = vpack.c.bf16 %v1397, %v1396
          %v1451 = vpack.c.bf16 %v1399, %v1398
          %v1452 = vpack.c.bf16 %v1401, %v1400
          %v1453 = vpack.c.bf16 %v1403, %v1402
          %v1454 = vpack.c.bf16 %v1405, %v1404
          %v1455 = vpack.c.bf16 %v1407, %v1406
          %v1456 = vpack.c.bf16 %v1409, %v1408
          %v1457 = vpack.c.bf16 %v1411, %v1410
          %v1458 = vpack.c.bf16 %v1413, %v1412
          %v1459 = vpack.c.bf16 %v1415, %v1414
          %v1460 = vpack.c.bf16 %v1417, %v1416
          %v1461 = vpack.c.bf16 %v1419, %v1418
          %v1462 = vpack.c.bf16 %v1421, %v1420
          %v1463 = vpack.c.bf16 %v1423, %v1422
          %v1464 = vpack.c.bf16 %v1425, %v1424
          %v1465 = vpack.c.bf16 %v1427, %v1426
          %v1466 = vpack.c.bf16 %v1429, %v1428
          %v1467 = vpack.c.bf16 %v1431, %v1430
          %v1468 = vpack.c.bf16 %v1433, %v1432
          %v1469 = vpack.c.bf16 %v1435, %v1434
          %v1470 = vpack.c.bf16 %v1437, %v1436
          %v1471 = vpack.c.bf16 %v1439, %v1438
          %v1504 = vunpack.c.l.b16 %v1440
          %v1505 = vunpack.c.h.b16 %v1440
          %v1506 = vunpack.c.l.b16 %v1441
          %v1507 = vunpack.c.h.b16 %v1441
          %v1508 = vunpack.c.l.b16 %v1442
          %v1509 = vunpack.c.h.b16 %v1442
          %v1510 = vunpack.c.l.b16 %v1443
          %v1511 = vunpack.c.h.b16 %v1443
          %v1512 = vunpack.c.l.b16 %v1444
          %v1513 = vunpack.c.h.b16 %v1444
          %v1514 = vunpack.c.l.b16 %v1445
          %v1515 = vunpack.c.h.b16 %v1445
          %v1516 = vunpack.c.l.b16 %v1446
          %v1517 = vunpack.c.h.b16 %v1446
          %v1518 = vunpack.c.l.b16 %v1447
          %v1519 = vunpack.c.h.b16 %v1447
          %v1520 = vunpack.c.l.b16 %v1448
          %v1521 = vunpack.c.h.b16 %v1448
          %v1522 = vunpack.c.l.b16 %v1449
          %v1523 = vunpack.c.h.b16 %v1449
          %v1524 = vunpack.c.l.b16 %v1450
          %v1525 = vunpack.c.h.b16 %v1450
          %v1526 = vunpack.c.l.b16 %v1451
          %v1527 = vunpack.c.h.b16 %v1451
          %v1528 = vunpack.c.l.b16 %v1452
          %v1529 = vunpack.c.h.b16 %v1452
          %v1530 = vunpack.c.l.b16 %v1453
          %v1531 = vunpack.c.h.b16 %v1453
          %v1532 = vunpack.c.l.b16 %v1454
          %v1533 = vunpack.c.h.b16 %v1454
          %v1534 = vunpack.c.l.b16 %v1455
          %v1535 = vunpack.c.h.b16 %v1455
          %v1536 = vunpack.c.l.b16 %v1456
          %v1537 = vunpack.c.h.b16 %v1456
          %v1538 = vunpack.c.l.b16 %v1457
          %v1539 = vunpack.c.h.b16 %v1457
          %v1540 = vunpack.c.l.b16 %v1458
          %v1541 = vunpack.c.h.b16 %v1458
          %v1542 = vunpack.c.l.b16 %v1459
          %v1543 = vunpack.c.h.b16 %v1459
          %v1544 = vunpack.c.l.b16 %v1460
          %v1545 = vunpack.c.h.b16 %v1460
          %v1546 = vunpack.c.l.b16 %v1461
          %v1547 = vunpack.c.h.b16 %v1461
          %v1548 = vunpack.c.l.b16 %v1462
          %v1549 = vunpack.c.h.b16 %v1462
          %v1550 = vunpack.c.l.b16 %v1463
          %v1551 = vunpack.c.h.b16 %v1463
          %v1552 = vunpack.c.l.b16 %v1464
          %v1553 = vunpack.c.h.b16 %v1464
          %v1554 = vunpack.c.l.b16 %v1465
          %v1555 = vunpack.c.h.b16 %v1465
          %v1556 = vunpack.c.l.b16 %v1466
          %v1557 = vunpack.c.h.b16 %v1466
          %v1558 = vunpack.c.l.b16 %v1467
          %v1559 = vunpack.c.h.b16 %v1467
          %v1560 = vunpack.c.l.b16 %v1468
          %v1561 = vunpack.c.h.b16 %v1468
          %v1562 = vunpack.c.l.b16 %v1469
          %v1563 = vunpack.c.h.b16 %v1469
          %v1564 = vunpack.c.l.b16 %v1470
          %v1565 = vunpack.c.h.b16 %v1470
          %v1566 = vunpack.c.l.b16 %v1471
          %v1567 = vunpack.c.h.b16 %v1471
          %v1568 = vpack.c.b16 %v1504, %v1504
          %v1569 = vpack.c.b16 %v1505, %v1505
          %v1570 = vpack.c.b16 %v1506, %v1506
          %v1571 = vpack.c.b16 %v1507, %v1507
          %v1572 = vpack.c.b16 %v1508, %v1508
          %v1573 = vpack.c.b16 %v1509, %v1509
          %v1574 = vpack.c.b16 %v1510, %v1510
          %v1575 = vpack.c.b16 %v1511, %v1511
          %v1576 = vpack.c.b16 %v1512, %v1512
          %v1577 = vpack.c.b16 %v1513, %v1513
          %v1578 = vpack.c.b16 %v1514, %v1514
          %v1579 = vpack.c.b16 %v1515, %v1515
          %v1580 = vpack.c.b16 %v1516, %v1516
          %v1581 = vpack.c.b16 %v1517, %v1517
          %v1582 = vpack.c.b16 %v1518, %v1518
          %v1583 = vpack.c.b16 %v1519, %v1519
          %v1584 = vpack.c.b16 %v1520, %v1520
          %v1585 = vpack.c.b16 %v1521, %v1521
          %v1586 = vpack.c.b16 %v1522, %v1522
          %v1587 = vpack.c.b16 %v1523, %v1523
          %v1588 = vpack.c.b16 %v1524, %v1524
          %v1589 = vpack.c.b16 %v1525, %v1525
          %v1590 = vpack.c.b16 %v1526, %v1526
          %v1591 = vpack.c.b16 %v1527, %v1527
          %v1592 = vpack.c.b16 %v1528, %v1528
          %v1593 = vpack.c.b16 %v1529, %v1529
          %v1594 = vpack.c.b16 %v1530, %v1530
          %v1595 = vpack.c.b16 %v1531, %v1531
          %v1596 = vpack.c.b16 %v1532, %v1532
          %v1597 = vpack.c.b16 %v1533, %v1533
          %v1598 = vpack.c.b16 %v1534, %v1534
          %v1599 = vpack.c.b16 %v1535, %v1535
          %v1600 = vpack.c.b16 %v1536, %v1536
          %v1601 = vpack.c.b16 %v1537, %v1537
          %v1602 = vpack.c.b16 %v1538, %v1538
          %v1603 = vpack.c.b16 %v1539, %v1539
          %v1604 = vpack.c.b16 %v1540, %v1540
          %v1605 = vpack.c.b16 %v1541, %v1541
          %v1606 = vpack.c.b16 %v1542, %v1542
          %v1607 = vpack.c.b16 %v1543, %v1543
          %v1608 = vpack.c.b16 %v1544, %v1544
          %v1609 = vpack.c.b16 %v1545, %v1545
          %v1610 = vpack.c.b16 %v1546, %v1546
          %v1611 = vpack.c.b16 %v1547, %v1547
          %v1612 = vpack.c.b16 %v1548, %v1548
          %v1613 = vpack.c.b16 %v1549, %v1549
          %v1614 = vpack.c.b16 %v1550, %v1550
          %v1615 = vpack.c.b16 %v1551, %v1551
          %v1616 = vpack.c.b16 %v1552, %v1552
          %v1617 = vpack.c.b16 %v1553, %v1553
          %v1618 = vpack.c.b16 %v1554, %v1554
          %v1619 = vpack.c.b16 %v1555, %v1555
          %v1620 = vpack.c.b16 %v1556, %v1556
          %v1621 = vpack.c.b16 %v1557, %v1557
          %v1622 = vpack.c.b16 %v1558, %v1558
          %v1623 = vpack.c.b16 %v1559, %v1559
          %v1624 = vpack.c.b16 %v1560, %v1560
          %v1625 = vpack.c.b16 %v1561, %v1561
          %v1626 = vpack.c.b16 %v1562, %v1562
          %v1627 = vpack.c.b16 %v1563, %v1563
          %v1628 = vpack.c.b16 %v1564, %v1564
          %v1629 = vpack.c.b16 %v1565, %v1565
          %v1630 = vpack.c.b16 %v1566, %v1566
          %v1631 = vpack.c.b16 %v1567, %v1567
          %1696 = vst [vmem:[%s287] sm:$0xf] %v1568
          %1697 = vst [vmem:[%s287 + $0x4] sm:$0xf] %v1569
          %1698 = vst [vmem:[%s287 + $0x8] sm:$0xf] %v1570
          %1699 = vst [vmem:[%s287 + $0xc] sm:$0xf] %v1571
          %1700 = vst [vmem:[%s287 + $0x10] sm:$0xf] %v1572
          %1701 = vst [vmem:[%s287 + $0x14] sm:$0xf] %v1573
          %1702 = vst [vmem:[%s287 + $0x18] sm:$0xf] %v1574
          %1703 = vst [vmem:[%s287 + $0x1c] sm:$0xf] %v1575
          %1704 = vst [vmem:[%s287 + $0x20] sm:$0xf] %v1576
          %1705 = vst [vmem:[%s287 + $0x24] sm:$0xf] %v1577
          %1706 = vst [vmem:[%s287 + $0x28] sm:$0xf] %v1578
          %1707 = vst [vmem:[%s287 + $0x2c] sm:$0xf] %v1579
          %1708 = vst [vmem:[%s287 + $0x30] sm:$0xf] %v1580
          %1709 = vst [vmem:[%s287 + $0x34] sm:$0xf] %v1581
          %1710 = vst [vmem:[%s287 + $0x38] sm:$0xf] %v1582
          %1711 = vst [vmem:[%s287 + $0x3c] sm:$0xf] %v1583
          %1712 = vst [vmem:[%s287 + $0x40] sm:$0xf] %v1584
          %1713 = vst [vmem:[%s287 + $0x44] sm:$0xf] %v1585
          %1714 = vst [vmem:[%s287 + $0x48] sm:$0xf] %v1586
          %1715 = vst [vmem:[%s287 + $0x4c] sm:$0xf] %v1587
          %1716 = vst [vmem:[%s287 + $0x50] sm:$0xf] %v1588
          %1717 = vst [vmem:[%s287 + $0x54] sm:$0xf] %v1589
          %1718 = vst [vmem:[%s287 + $0x58] sm:$0xf] %v1590
          %1719 = vst [vmem:[%s287 + $0x5c] sm:$0xf] %v1591
          %1720 = vst [vmem:[%s287 + $0x60] sm:$0xf] %v1592
          %1721 = vst [vmem:[%s287 + $0x64] sm:$0xf] %v1593
          %1722 = vst [vmem:[%s287 + $0x68] sm:$0xf] %v1594
          %1723 = vst [vmem:[%s287 + $0x6c] sm:$0xf] %v1595
          %1724 = vst [vmem:[%s287 + $0x70] sm:$0xf] %v1596
          %1725 = vst [vmem:[%s287 + $0x74] sm:$0xf] %v1597
          %1726 = vst [vmem:[%s287 + $0x78] sm:$0xf] %v1598
          %1727 = vst [vmem:[%s287 + $0x7c] sm:$0xf] %v1599
          %1728 = vst [vmem:[%s287 + $0x80] sm:$0xf] %v1600
          %1729 = vst [vmem:[%s287 + $0x84] sm:$0xf] %v1601
          %1730 = vst [vmem:[%s287 + $0x88] sm:$0xf] %v1602
          %1731 = vst [vmem:[%s287 + $0x8c] sm:$0xf] %v1603
          %1732 = vst [vmem:[%s287 + $0x90] sm:$0xf] %v1604
          %1733 = vst [vmem:[%s287 + $0x94] sm:$0xf] %v1605
          %1734 = vst [vmem:[%s287 + $0x98] sm:$0xf] %v1606
          %1735 = vst [vmem:[%s287 + $0x9c] sm:$0xf] %v1607
          %1736 = vst [vmem:[%s287 + $0xa0] sm:$0xf] %v1608
          %1737 = vst [vmem:[%s287 + $0xa4] sm:$0xf] %v1609
          %1738 = vst [vmem:[%s287 + $0xa8] sm:$0xf] %v1610
          %1739 = vst [vmem:[%s287 + $0xac] sm:$0xf] %v1611
          %1740 = vst [vmem:[%s287 + $0xb0] sm:$0xf] %v1612
          %1741 = vst [vmem:[%s287 + $0xb4] sm:$0xf] %v1613
          %1742 = vst [vmem:[%s287 + $0xb8] sm:$0xf] %v1614
          %1743 = vst [vmem:[%s287 + $0xbc] sm:$0xf] %v1615
          %1744 = vst [vmem:[%s287 + $0xc0] sm:$0xf] %v1616
          %1745 = vst [vmem:[%s287 + $0xc4] sm:$0xf] %v1617
          %1746 = vst [vmem:[%s287 + $0xc8] sm:$0xf] %v1618
          %1747 = vst [vmem:[%s287 + $0xcc] sm:$0xf] %v1619
          %1748 = vst [vmem:[%s287 + $0xd0] sm:$0xf] %v1620
          %1749 = vst [vmem:[%s287 + $0xd4] sm:$0xf] %v1621
          %1750 = vst [vmem:[%s287 + $0xd8] sm:$0xf] %v1622
          %1751 = vst [vmem:[%s287 + $0xdc] sm:$0xf] %v1623
          %1752 = vst [vmem:[%s287 + $0xe0] sm:$0xf] %v1624
          %1753 = vst [vmem:[%s287 + $0xe4] sm:$0xf] %v1625
          %1754 = vst [vmem:[%s287 + $0xe8] sm:$0xf] %v1626
          %1755 = vst [vmem:[%s287 + $0xec] sm:$0xf] %v1627
          %1756 = vst [vmem:[%s287 + $0xf0] sm:$0xf] %v1628
          %1757 = vst [vmem:[%s287 + $0xf4] sm:$0xf] %v1629
          %1758 = vst [vmem:[%s287 + $0xf8] sm:$0xf] %v1630
          %1759 = vst [vmem:[%s287 + $0xfc] sm:$0xf] %v1631
        $region52: #{tpu_custom_call.1} parent=35 // pred_fallthru
          _
        %s1760 = sand.u32 %s159, 1
        %s1761 = scalar_lea.sflag [#allocation5], %s1760
        %s1762 = sand.u32 %s159, 1
        %s1763 = smul.addr %s1762, 256
        %s1764 = scalar_lea.vmem [#allocation8], %s1763
        // Predicated region
        $region53: #{tpu_custom_call.1} parent=35 // pred_check
          %p1765 = pneg %p169
        $region54: #{tpu_custom_call.1} parent=35 // pred_check_branch
          %1767 = sbr.rel (%p1765) target = $region56
        $region55: #{tpu_custom_call.1} parent=35 // pred_region
          %s1768 = smul.u32 64, %s27
          %s1770 = ssub.s32 4096, 4096
          %1771 = vsyncadd %s1761, %s1770
          %s1772 = sadd.s32 %s28, %s1768
          %s1773 = smul.addr %s1772, 64
          %s1774 = scalar_lea.hbm %s4, %s1773
          %s1775 = sshll.u32 %s1764, 4
          %s1776 = int_to_ptr.vmem [resolvable:$true] %s1775
          %1781 = dma.vmem_to_hbm [thread:$0]  %s1776, 4096, %s1774, %s1761, 64, 64, 4
        $region56: #{tpu_custom_call.1} parent=35 // pred_fallthru
          _
      $region36: #{tpu_custom_call.1} parent=5 // pred_fallthru
        _
      %p1782 = scmp.le.s32.totalorder 2, %s17
      // Predicated region
      $region57: #{tpu_custom_call.1} parent=5 // pred_check
        %p1783 = pneg %p1782
      $region58: #{tpu_custom_call.1} parent=5 // pred_check_branch
        %1785 = sbr.rel (%p1783) target = $region60
      $region59: #{tpu_custom_call.1} parent=5 // pred_region
        %s1786 = ssub.s32 %s17, 2
        // Predicated region
        $region61: #{tpu_custom_call.1} parent=59 // pred_check
          %p1787 = pneg %p175
        $region62: #{tpu_custom_call.1} parent=59 // pred_check_branch
          %1789 = sbr.rel (%p1787) target = $region64
        $region63: #{tpu_custom_call.1} parent=59 // pred_region
          %s1790 = sand.u32 %s160, 1
          %s1791 = scalar_lea.sflag [#allocation5], %s1790
          %s1792 = sand.u32 %s160, 1
          %s1793 = smul.addr %s1792, 256
          %s1794 = scalar_lea.vmem [#allocation8], %s1793
          %1795 = dma.done %s1791, 4096
        $region64: #{tpu_custom_call.1} parent=59 // pred_fallthru
          _
      $region60: #{tpu_custom_call.1} parent=5 // pred_fallthru
        _
    $region6: #{tpu_custom_call.1} parent=1 // loop_footer
      %s21 = sadd.s32 1, %s17
    $region7: #{tpu_custom_call.1} parent=1 // loop_footer_branch
      %16 = sbr.rel target = $region3
    $region8: #{tpu_custom_call.1} parent=1 // loop_exit
      _
    %1796 = vsyncpa [#allocation4], 1
    %s1797 = scalar_lea.sflag [#allocation4], 1
    %1798 = vsyncpa %s1797, 1
    %1799 = vsyncpa [#allocation7], 1
    %1800 = vsyncpa [#allocation5], 1
    %s1801 = scalar_lea.sflag [#allocation5], 1
    %1802 = vsyncpa %s1801, 1

</llo_original>
